<compile_context>
chip_gen: v5e
topology: v5e:2x2
jax: 0.10.0
libtpu: 0.0.40
codegen_flags: <defaults>
</compile_context>

<pallas_src>
import functools

import jax
import jax.numpy as jnp
from jax import lax
from jax.experimental import pallas as pl
from jax.experimental.pallas import tpu as pltpu


_SELU_ALPHA = 1.6732632423543772848170429916717
_SELU_SCALE = 1.0507009873554804934193349852946
_NEG_BIG = -1e30   # fill for padded logit columns (exp() underflows to 0)


def _round_up(x, m):
    return (x + m - 1) // m * m


def _vmem_limit(resident_bytes):
    # Scoped-VMEM cap derived from the actual resident set (+50% / +2 MiB
    # headroom), clamped to stay under v7x's 64 MiB physical VMEM.
    want = int(resident_bytes * 1.5) + (2 << 20)
    return int(max(32 << 20, min(want, 56 << 20)))


# ---------------------------------------------------------------------------
# Kernel G: GRU recurrence + fused SELU  ->  bf16 activations
# ---------------------------------------------------------------------------
def _gru_selu_kernel(x_ref, wih_ref, whh_ref, bih_ref, bhh_ref,
                     act_ref, gi_sc, act_sc, *, hidden_pad, seq_len, unroll):
    Hp = hidden_pad

    # Hoisted input projection: one (seq_p, Ip) @ (Ip, 3Hp) bf16 MXU matmul.
    gi_sc[...] = (jnp.dot(x_ref[...], wih_ref[...],
                          preferred_element_type=jnp.float32) + bih_ref[...])

    whh = whh_ref[...]          # (Hp, 3Hp) bf16, gate slabs 128-lane aligned
    bhh = bhh_ref[...]          # (1, 3Hp) f32
    act_sc[...] = jnp.zeros_like(act_sc)   # padded seq rows stay exactly zero

    def step(t, h):             # h: (1, Hp) f32 carry
        gi = gi_sc[pl.ds(t, 1), :]                                  # (1, 3Hp)
        gh = jnp.dot(h.astype(jnp.bfloat16), whh,
                     preferred_element_type=jnp.float32) + bhh      # (1, 3Hp)
        # 128-lane-aligned gate slabs: no intra-vreg lane shuffles.
        i_r, i_z, i_n = gi[:, 0:Hp], gi[:, Hp:2 * Hp], gi[:, 2 * Hp:3 * Hp]
        h_r, h_z, h_n = gh[:, 0:Hp], gh[:, Hp:2 * Hp], gh[:, 2 * Hp:3 * Hp]
        r = jax.nn.sigmoid(i_r + h_r)
        z = jax.nn.sigmoid(i_z + h_z)
        n = jnp.tanh(i_n + r * h_n)
        h_new = (1.0 - z) * n + z * h
        # SELU fused into the per-step store (EUP exp overlaps the store).
        # (v5e note: these could be coalesced into 8-row batched stores.)
        act = _SELU_SCALE * jnp.where(
            h_new > 0.0, h_new, _SELU_ALPHA * (jnp.exp(h_new) - 1.0))
        act_sc[pl.ds(t, 1), :] = act
        return h_new

    lax.fori_loop(0, seq_len, step, jnp.zeros((1, Hp), jnp.float32),
                  unroll=unroll)

    # Single bulk f32 -> bf16 cast, hoisted out of the FC tile loop.
    act_ref[...] = act_sc[...].astype(jnp.bfloat16)


# ---------------------------------------------------------------------------
# Kernel F: tiled FC + per-part online logsumexp
#   grid = (n_parts ["parallel"], tiles_per_part ["arbitrary"])
# ---------------------------------------------------------------------------
def _fc_lse_kernel(act_ref, fcw_ref, fcb_ref,
                   logits_ref, m_ref, l_ref, m_sc, l_sc):
    j = pl.program_id(1)

    @pl.when(j == 0)
    def _():
        m_sc[...] = jnp.full_like(m_sc, -jnp.inf)
        l_sc[...] = jnp.zeros_like(l_sc)

    # bf16 x bf16 MXU matmul with f32 accumulation.
    y = (jnp.dot(act_ref[...], fcw_ref[...],
                 preferred_element_type=jnp.float32)
         + fcb_ref[...])                                  # (seq_p, TILE_L) f32
    logits_ref[...] = y                                   # lane-dense store

    m_new = jnp.maximum(m_sc[...], jnp.max(y, axis=-1, keepdims=True))
    l_sc[...] = (l_sc[...] * jnp.exp(m_sc[...] - m_new)
                 + jnp.sum(jnp.exp(y - m_new), axis=-1, keepdims=True))
    m_sc[...] = m_new

    @pl.when(j == pl.num_programs(1) - 1)
    def _():
        m_ref[0] = m_sc[...]
        l_ref[0] = l_sc[...]


# ---------------------------------------------------------------------------
# Kernel N: score = logits - lse (in place over the logits buffer)
# ---------------------------------------------------------------------------
def _normalize_kernel(logits_ref, lse_ref, out_ref):
    out_ref[...] = logits_ref[...] - lse_ref[...]


# ---------------------------------------------------------------------------
# Weight layout helpers (pad per-gate so each gate slab is 128-lane aligned)
# ---------------------------------------------------------------------------
def _pad_gate_weight(w, hidden, hid_p, in_p):
    # w: (3*hidden, in_dim), PyTorch gate order [r, z, n] -> (in_p, 3*hid_p) bf16
    in_dim = w.shape[1]
    w3 = w.reshape(3, hidden, in_dim).astype(jnp.float32)
    w3 = jnp.pad(w3, ((0, 0), (0, hid_p - hidden), (0, in_p - in_dim)))
    w3 = jnp.transpose(w3, (2, 0, 1))            # (in_p, 3, Hp)
    return w3.reshape(in_p, 3 * hid_p).astype(jnp.bfloat16)


def _pad_gate_bias(b, hidden, hid_p):
    b3 = b.reshape(3, hidden).astype(jnp.float32)
    b3 = jnp.pad(b3, ((0, 0), (0, hid_p - hidden)))
    return b3.reshape(1, 3 * hid_p)


# ---------------------------------------------------------------------------
# Forward wrapper
# ---------------------------------------------------------------------------
def traj_pre_simple_forward(x, w_ih, w_hh, b_ih, b_hh, fc_w, fc_b,
                            *, hidden_size, tile_l=2048, n_parts=2):
    """x: (seq, input_size) f32. Returns (seq, loc_size) log-probs."""
    seq, input_size = x.shape
    loc_size = fc_w.shape[0]

    seq_p = _round_up(seq, 8)
    in_p = _round_up(input_size, 128)
    hid_p = _round_up(hidden_size, 128)

    tile_l = min(tile_l, _round_up(loc_size, 128))   # multiple of 128
    if _round_up(loc_size, tile_l) // tile_l < n_parts:
        n_parts = 1                                   # not enough tiles to split
    loc_p = _round_up(loc_size, tile_l * n_parts)
    n_tiles = loc_p // tile_l
    tiles_per_part = n_tiles // n_parts

    # Bounded partial unroll: full for short sequences, 8 for long ones.
    unroll = seq if seq <= 32 else 8

    x_p = jnp.pad(x.astype(jnp.float32),
                  ((0, seq_p - seq), (0, in_p - input_size))
                  ).astype(jnp.bfloat16)
    wih_t = _pad_gate_weight(w_ih, hidden_size, hid_p, in_p)     # (Ip, 3Hp) bf16
    whh_t = _pad_gate_weight(w_hh, hidden_size, hid_p, hid_p)    # (Hp, 3Hp) bf16
    bih = _pad_gate_bias(b_ih, hidden_size, hid_p)               # (1, 3Hp)  f32
    bhh = _pad_gate_bias(b_hh, hidden_size, hid_p)               # (1, 3Hp)  f32
    # fc weight streamed in bf16 L-tiles (half the HBM/VMEM bytes); f32 accum.
    fcw_t = jnp.pad(fc_w.T.astype(jnp.float32),
                    ((0, hid_p - hidden_size), (0, loc_p - loc_size))
                    ).astype(jnp.bfloat16)                       # (Hp, Lp)
    # Padded logit columns get a huge negative bias so logsumexp ignores them.
    fcb = jnp.pad(fc_b.astype(jnp.float32), (0, loc_p - loc_size),
                  constant_values=_NEG_BIG)[None, :]             # (1, Lp)

    # ---- Kernel G: GRU + SELU -> bf16 activations ---------------------------
    g_resident = (seq_p * in_p * 2 + in_p * 3 * hid_p * 2
                  + hid_p * 3 * hid_p * 2 + 2 * 3 * hid_p * 4
                  + seq_p * hid_p * 2            # bf16 act output
                  + seq_p * 3 * hid_p * 4        # gi scratch f32
                  + seq_p * hid_p * 4)           # act scratch f32
    act = pl.pallas_call(
        functools.partial(_gru_selu_kernel, hidden_pad=hid_p,
                          seq_len=seq, unroll=unroll),
        out_shape=jax.ShapeDtypeStruct((seq_p, hid_p), jnp.bfloat16),
        scratch_shapes=[pltpu.VMEM((seq_p, 3 * hid_p), jnp.float32),  # gi
                        pltpu.VMEM((seq_p, hid_p), jnp.float32)],     # selu acts
        compiler_params=pltpu.CompilerParams(
            vmem_limit_bytes=_vmem_limit(g_resident)),
    )(x_p, wih_t, whh_t, bih, bhh)

    # ---- Kernel F: FC tiles + per-part online logsumexp ---------------------
    f_resident = (2 * seq_p * hid_p * 2 + 2 * hid_p * tile_l * 2
                  + 2 * 8 * tile_l * 4 + 2 * seq_p * tile_l * 4
                  + 4 * seq_p * 128 * 4 + 2 * seq_p * 128 * 4)
    logits, m_part, l_part = pl.pallas_call(
        _fc_lse_kernel,
        grid=(n_parts, tiles_per_part),
        in_specs=[
            pl.BlockSpec((seq_p, hid_p), lambda p, j: (0, 0)),           # act
            pl.BlockSpec((hid_p, tile_l),
                         lambda p, j: (0, p * tiles_per_part + j)),      # fc_w tile
            pl.BlockSpec((1, tile_l),
                         lambda p, j: (0, p * tiles_per_part + j)),      # fc_b tile
        ],
        out_specs=[
            pl.BlockSpec((seq_p, tile_l),
                         lambda p, j: (0, p * tiles_per_part + j)),      # raw logits
            pl.BlockSpec((1, seq_p, 1), lambda p, j: (p, 0, 0)),         # m partial
            pl.BlockSpec((1, seq_p, 1), lambda p, j: (p, 0, 0)),         # l partial
        ],
        out_shape=(jax.ShapeDtypeStruct((seq_p, loc_p), jnp.float32),
                   jax.ShapeDtypeStruct((n_parts, seq_p, 1), jnp.float32),
                   jax.ShapeDtypeStruct((n_parts, seq_p, 1), jnp.float32)),
        scratch_shapes=[pltpu.VMEM((seq_p, 1), jnp.float32),     # running max
                        pltpu.VMEM((seq_p, 1), jnp.float32)],    # running sum-exp
        compiler_params=pltpu.CompilerParams(
            dimension_semantics=("parallel", "arbitrary"),
            vmem_limit_bytes=_vmem_limit(f_resident)),
    )(act, fcw_t, fcb)

    # Merge per-part (m, l) partials into the global logsumexp (tiny, JAX glue).
    m_glob = jnp.max(m_part, axis=0)                               # (seq_p, 1)
    lse = m_glob + jnp.log(
        jnp.sum(l_part * jnp.exp(m_part - m_glob), axis=0))        # (seq_p, 1)

    # ---- Kernel N: score = logits - lse, aliased in place over logits -------
    n_resident = 4 * seq_p * tile_l * 4 + 2 * seq_p * 128 * 4
    score_p = pl.pallas_call(
        _normalize_kernel,
        grid=(n_tiles,),
        in_specs=[pl.BlockSpec((seq_p, tile_l), lambda j: (0, j)),
                  pl.BlockSpec((seq_p, 1), lambda j: (0, 0))],
        out_specs=pl.BlockSpec((seq_p, tile_l), lambda j: (0, j)),
        out_shape=jax.ShapeDtypeStruct((seq_p, loc_p), jnp.float32),
        input_output_aliases={0: 0},
        compiler_params=pltpu.CompilerParams(
            dimension_semantics=("parallel",),
            vmem_limit_bytes=_vmem_limit(n_resident)),
    )(logits, lse)

    return score_p[:seq, :loc_size]


# ---------------------------------------------------------------------------
# Deterministic parameter construction (shapes match the PyTorch module)
# ---------------------------------------------------------------------------
def _xavier_uniform(key, shape):
    fan_out, fan_in = shape
    bound = jnp.sqrt(6.0 / (fan_in + fan_out))
    return jax.random.uniform(key, shape, jnp.float32, -bound, bound)


def _orthogonal(key, shape):
    rows, cols = shape
    a = jax.random.normal(key, (max(rows, cols), min(rows, cols)), jnp.float32)
    q, r = jnp.linalg.qr(a)
    d = jnp.sign(jnp.diag(r))
    d = jnp.where(d == 0, 1.0, d)
    q = q * d
    if rows < cols:
        q = q.T
    return q[:rows, :cols]


def make_params(key, *, loc_size, loc_emb_size, tim_size, tim_emb_size, hidden_size):
    input_size = loc_emb_size + tim_emb_size
    ks = jax.random.split(key, 6)
    emb_loc = jax.random.normal(ks[0], (loc_size, loc_emb_size), jnp.float32)
    emb_tim = jax.random.normal(ks[1], (tim_size, tim_emb_size), jnp.float32)
    # GRU weights (PyTorch layout: (3H, in)), init per init_weights():
    w_ih = _xavier_uniform(ks[2], (3 * hidden_size, input_size))
    w_hh = _orthogonal(ks[3], (3 * hidden_size, hidden_size))
    b_ih = jnp.zeros((3 * hidden_size,), jnp.float32)
    b_hh = jnp.zeros((3 * hidden_size,), jnp.float32)
    bound = 1.0 / jnp.sqrt(hidden_size)
    fc_w = jax.random.uniform(ks[4], (loc_size, hidden_size), jnp.float32, -bound, bound)
    fc_b = jax.random.uniform(ks[5], (loc_size,), jnp.float32, -bound, bound)
    return dict(emb_loc=emb_loc, emb_tim=emb_tim, w_ih=w_ih, w_hh=w_hh,
                b_ih=b_ih, b_hh=b_hh, fc_w=fc_w, fc_b=fc_b)


@functools.partial(jax.jit, static_argnames=("hidden_size", "tile_l"))
def traj_pre_simple(loc, tim, params, *, hidden_size, tile_l=2048):
    # loc, tim: (seq, 1) int32 — batch of 1, as in the PyTorch forward.
    loc_emb = jnp.take(params["emb_loc"], loc[:, 0], axis=0)   # (seq, loc_emb)
    tim_emb = jnp.take(params["emb_tim"], tim[:, 0], axis=0)   # (seq, tim_emb)
    x = jnp.concatenate([loc_emb, tim_emb], axis=-1)           # (seq, I)
    # Dropout is identity in eval mode.
    return traj_pre_simple_forward(
        x, params["w_ih"], params["w_hh"], params["b_ih"], params["b_hh"],
        params["fc_w"], params["fc_b"], hidden_size=hidden_size, tile_l=tile_l)


# ---------------------------------------------------------------------------
# Pure-JAX f32 reference (for the correctness tolerance check)
# ---------------------------------------------------------------------------
def _reference_forward(x, w_ih, w_hh, b_ih, b_hh, fc_w, fc_b, hidden_size):
    H = hidden_size

    def gru_step(h, xt):
        gi = w_ih @ xt + b_ih          # (3H,)
        gh = w_hh @ h + b_hh           # (3H,)
        r = jax.nn.sigmoid(gi[:H] + gh[:H])
        z = jax.nn.sigmoid(gi[H:2 * H] + gh[H:2 * H])
        n = jnp.tanh(gi[2 * H:] + r * gh[2 * H:])
        h_new = (1.0 - z) * n + z * h
        return h_new, h_new

    _, outs = lax.scan(gru_step, jnp.zeros((H,), jnp.float32), x)   # (seq, H)
    act = _SELU_SCALE * jnp.where(outs > 0.0, outs,
                                  _SELU_ALPHA * (jnp.exp(outs) - 1.0))
    y = act @ fc_w.T + fc_b
    return jax.nn.log_softmax(y, axis=-1)


if __name__ == "__main__":
    # Small, module-consistent shapes; loc_size chosen so the FC phase
    # exercises multiple L-tiles and both logsumexp parts (tile_l=128).
    LOC_SIZE, LOC_EMB = 300, 16
    TIM_SIZE, TIM_EMB = 48, 16
    HIDDEN = 32
    SEQ = 8

    key = jax.random.PRNGKey(0)
    pkey, lkey, tkey = jax.random.split(key, 3)
    params = make_params(pkey, loc_size=LOC_SIZE, loc_emb_size=LOC_EMB,
                         tim_size=TIM_SIZE, tim_emb_size=TIM_EMB,
                         hidden_size=HIDDEN)

    loc = jax.random.randint(lkey, (SEQ, 1), 0, LOC_SIZE, dtype=jnp.int32)
    tim = jax.random.randint(tkey, (SEQ, 1), 0, TIM_SIZE, dtype=jnp.int32)

    score = traj_pre_simple(loc, tim, params, hidden_size=HIDDEN, tile_l=128)
    jax.block_until_ready(score)

    assert score.shape == (SEQ, LOC_SIZE)
    # log_softmax rows should (log-)sum to ~0.
    row_sums = jnp.exp(jax.scipy.special.logsumexp(score, axis=-1))
    assert bool(jnp.all(jnp.abs(row_sums - 1.0) < 1e-4))

    # Compare against the f32 JAX reference (bf16 matmul operands in the
    # kernel -> loose absolute tolerance).
    loc_emb = jnp.take(params["emb_loc"], loc[:, 0], axis=0)
    tim_emb = jnp.take(params["emb_tim"], tim[:, 0], axis=0)
    x = jnp.concatenate([loc_emb, tim_emb], axis=-1)
    ref = _reference_forward(x, params["w_ih"], params["w_hh"], params["b_ih"],
                             params["b_hh"], params["fc_w"], params["fc_b"],
                             HIDDEN)
    assert bool(jnp.max(jnp.abs(score - ref)) < 1e-1)

    print("KERNEL_OK")
</pallas_src>

<mosaic_0001>
module attributes {stable_mosaic.version = 11 : i64} {
  func.func @_fc_lse_kernel(%arg0: i32, %arg1: i32, %arg2: memref<8x128xbf16, #tpu.memory_space<vmem>>, %arg3: memref<128x128xbf16, #tpu.memory_space<vmem>>, %arg4: memref<1x128xf32, #tpu.memory_space<vmem>>, %arg5: memref<8x128xf32, #tpu.memory_space<vmem>>, %arg6: memref<1x8x1xf32, #tpu.memory_space<vmem>>, %arg7: memref<1x8x1xf32, #tpu.memory_space<vmem>>, %arg8: memref<8x1xf32, #tpu.memory_space<vmem>>, %arg9: memref<8x1xf32, #tpu.memory_space<vmem>>) attributes {dimension_semantics = [#tpu.dimension_semantics<parallel>, #tpu.dimension_semantics<arbitrary>], iteration_bounds = array<i64: 2, 2>, scalar_prefetch = 0 : i64, scratch_operands = 2 : i64, tpu.core_type = #tpu.core_type<tc>, window_params = [{pipeline_mode = #tpu.pipeline_mode<synchronous>, transform_indices = @transform_0, window_bounds = array<i64: 8, 128>}, {transform_indices = @transform_1, window_bounds = array<i64: 128, 128>}, {transform_indices = @transform_2, window_bounds = array<i64: 1, 128>}, {transform_indices = @transform_3, window_bounds = array<i64: 8, 128>}, {transform_indices = @transform_4, window_bounds = array<i64: 1, 8, 1>}, {transform_indices = @transform_5, window_bounds = array<i64: 1, 8, 1>}]} {
    %c0_i32 = arith.constant 0 : i32
    %0 = arith.cmpi eq, %arg1, %c0_i32 : i32
    %1 = arith.extui %0 : i1 to i32
    %c0_i32_0 = arith.constant 0 : i32
    %2 = arith.cmpi ne, %1, %c0_i32_0 : i32
    scf.if %2 {
      %cst_21 = arith.constant 0xFF800000 : f32
      %30 = vector.broadcast %cst_21 : f32 to vector<8x1xf32>
      %c0_22 = arith.constant 0 : index
      %c0_23 = arith.constant 0 : index
      %31 = vector.load %arg8[%c0_22, %c0_23] : memref<8x1xf32, #tpu.memory_space<vmem>>, vector<8x1xf32>
      tpu.vector_store %arg8[%c0_22, %c0_23], %30 {strides = array<i32>} : memref<8x1xf32, #tpu.memory_space<vmem>>, vector<8x1xf32>,
      %cst_24 = arith.constant 0.000000e+00 : f32
      %32 = vector.broadcast %cst_24 : f32 to vector<8x1xf32>
      %c0_25 = arith.constant 0 : index
      %c0_26 = arith.constant 0 : index
      %33 = vector.load %arg9[%c0_25, %c0_26] : memref<8x1xf32, #tpu.memory_space<vmem>>, vector<8x1xf32>
      tpu.vector_store %arg9[%c0_25, %c0_26], %32 {strides = array<i32>} : memref<8x1xf32, #tpu.memory_space<vmem>>, vector<8x1xf32>,
    } else {
    }
    %c0 = arith.constant 0 : index
    %c0_1 = arith.constant 0 : index
    %3 = vector.load %arg2[%c0, %c0_1] : memref<8x128xbf16, #tpu.memory_space<vmem>>, vector<8x128xbf16>
    %c0_2 = arith.constant 0 : index
    %c0_3 = arith.constant 0 : index
    %4 = vector.load %arg3[%c0_2, %c0_3] : memref<128x128xbf16, #tpu.memory_space<vmem>>, vector<128x128xbf16>
    %cst = arith.constant dense<0.000000e+00> : vector<8x128xf32>
    %5 = tpu.matmul %3, %4, %cst {dimension_numbers = #tpu.dot_dimension_numbers<[1], [0], [0], [1], [0, 0, 1, 1], [], []>} : vector<8x128xbf16>, vector<128x128xbf16>, vector<8x128xf32> -> vector<8x128xf32>
    %c0_4 = arith.constant 0 : index
    %c0_5 = arith.constant 0 : index
    %6 = vector.load %arg4[%c0_4, %c0_5] : memref<1x128xf32, #tpu.memory_space<vmem>>, vector<1x128xf32>
    %7 = vector.broadcast %6 : vector<1x128xf32> to vector<8x128xf32>
    %8 = arith.addf %5, %7 : vector<8x128xf32>
    %c0_6 = arith.constant 0 : index
    %c0_7 = arith.constant 0 : index
    %9 = vector.load %arg5[%c0_6, %c0_7] : memref<8x128xf32, #tpu.memory_space<vmem>>, vector<8x128xf32>
    tpu.vector_store %arg5[%c0_6, %c0_7], %8 {strides = array<i32>} : memref<8x128xf32, #tpu.memory_space<vmem>>, vector<8x128xf32>,
    %c0_8 = arith.constant 0 : index
    %c0_9 = arith.constant 0 : index
    %10 = vector.load %arg8[%c0_8, %c0_9] : memref<8x1xf32, #tpu.memory_space<vmem>>, vector<8x1xf32>
    %cst_10 = arith.constant dense<0xFF800000> : vector<8xf32>
    %11 = vector.multi_reduction <maximumf>, %8, %cst_10 [1] : vector<8x128xf32> to vector<8xf32>
    %12 = vector.shape_cast %11 : vector<8xf32> to vector<8x1xf32>
    %13 = arith.maximumf %10, %12 : vector<8x1xf32>
    %c0_11 = arith.constant 0 : index
    %c0_12 = arith.constant 0 : index
    %14 = vector.load %arg9[%c0_11, %c0_12] : memref<8x1xf32, #tpu.memory_space<vmem>>, vector<8x1xf32>
    %c0_13 = arith.constant 0 : index
    %c0_14 = arith.constant 0 : index
    %15 = vector.load %arg8[%c0_13, %c0_14] : memref<8x1xf32, #tpu.memory_space<vmem>>, vector<8x1xf32>
    %16 = arith.subf %15, %13 : vector<8x1xf32>
    %17 = math.exp %16 : vector<8x1xf32>
    %18 = arith.mulf %14, %17 : vector<8x1xf32>
    %19 = vector.broadcast %13 : vector<8x1xf32> to vector<8x128xf32>
    %20 = arith.subf %8, %19 : vector<8x128xf32>
    %21 = math.exp %20 : vector<8x128xf32>
    %cst_15 = arith.constant dense<0.000000e+00> : vector<8xf32>
    %22 = vector.multi_reduction <add>, %21, %cst_15 [1] : vector<8x128xf32> to vector<8xf32>
    %23 = vector.shape_cast %22 : vector<8xf32> to vector<8x1xf32>
    %24 = arith.addf %18, %23 : vector<8x1xf32>
    %c0_16 = arith.constant 0 : index
    %c0_17 = arith.constant 0 : index
    %25 = vector.load %arg9[%c0_16, %c0_17] : memref<8x1xf32, #tpu.memory_space<vmem>>, vector<8x1xf32>
    tpu.vector_store %arg9[%c0_16, %c0_17], %24 {strides = array<i32>} : memref<8x1xf32, #tpu.memory_space<vmem>>, vector<8x1xf32>,
    %c0_18 = arith.constant 0 : index
    %c0_19 = arith.constant 0 : index
    %26 = vector.load %arg8[%c0_18, %c0_19] : memref<8x1xf32, #tpu.memory_space<vmem>>, vector<8x1xf32>
    tpu.vector_store %arg8[%c0_18, %c0_19], %13 {strides = array<i32>} : memref<8x1xf32, #tpu.memory_space<vmem>>, vector<8x1xf32>,
    %c1_i32 = arith.constant 1 : i32
    %27 = arith.cmpi eq, %arg1, %c1_i32 : i32
    %28 = arith.extui %27 : i1 to i32
    %c0_i32_20 = arith.constant 0 : i32
    %29 = arith.cmpi ne, %28, %c0_i32_20 : i32
    scf.if %29 {
      %c0_21 = arith.constant 0 : index
      %c0_22 = arith.constant 0 : index
      %30 = vector.load %arg8[%c0_21, %c0_22] : memref<8x1xf32, #tpu.memory_space<vmem>>, vector<8x1xf32>
      %c0_23 = arith.constant 0 : index
      %c0_24 = arith.constant 0 : index
      %c0_25 = arith.constant 0 : index
      %31 = vector.load %arg6[%c0_23, %c0_24, %c0_25] : memref<1x8x1xf32, #tpu.memory_space<vmem>>, vector<1x8x1xf32>
      %32 = vector.shape_cast %31 : vector<1x8x1xf32> to vector<8x1xf32>
      %33 = vector.shape_cast %30 : vector<8x1xf32> to vector<1x8x1xf32>
      tpu.vector_store %arg6[%c0_23, %c0_24, %c0_25], %33 {strides = array<i32>} : memref<1x8x1xf32, #tpu.memory_space<vmem>>, vector<1x8x1xf32>,
      %c0_26 = arith.constant 0 : index
      %c0_27 = arith.constant 0 : index
      %34 = vector.load %arg9[%c0_26, %c0_27] : memref<8x1xf32, #tpu.memory_space<vmem>>, vector<8x1xf32>
      %c0_28 = arith.constant 0 : index
      %c0_29 = arith.constant 0 : index
      %c0_30 = arith.constant 0 : index
      %35 = vector.load %arg7[%c0_28, %c0_29, %c0_30] : memref<1x8x1xf32, #tpu.memory_space<vmem>>, vector<1x8x1xf32>
      %36 = vector.shape_cast %35 : vector<1x8x1xf32> to vector<8x1xf32>
      %37 = vector.shape_cast %34 : vector<8x1xf32> to vector<1x8x1xf32>
      tpu.vector_store %arg7[%c0_28, %c0_29, %c0_30], %37 {strides = array<i32>} : memref<1x8x1xf32, #tpu.memory_space<vmem>>, vector<1x8x1xf32>,
    } else {
    }
    return
  }
  func.func @transform_0(%arg0: i32, %arg1: i32) -> (i32, i32) {
    %c0_i32 = arith.constant 0 : i32
    %c0_i32_0 = arith.constant 0 : i32
    %c0_i32_1 = arith.constant 0 : i32
    return %c0_i32, %c0_i32_0 : i32, i32
  }
  func.func @transform_1(%arg0: i32, %arg1: i32) -> (i32, i32) {
    %c2_i32 = arith.constant 2 : i32
    %0 = arith.muli %arg0, %c2_i32 : i32
    %1 = arith.addi %0, %arg1 : i32
    %c0_i32 = arith.constant 0 : i32
    %c0_i32_0 = arith.constant 0 : i32
    return %c0_i32, %1 : i32, i32
  }
  func.func @transform_2(%arg0: i32, %arg1: i32) -> (i32, i32) {
    %c2_i32 = arith.constant 2 : i32
    %0 = arith.muli %arg0, %c2_i32 : i32
    %1 = arith.addi %0, %arg1 : i32
    %c0_i32 = arith.constant 0 : i32
    %c0_i32_0 = arith.constant 0 : i32
    return %c0_i32, %1 : i32, i32
  }
  func.func @transform_3(%arg0: i32, %arg1: i32) -> (i32, i32) {
    %c2_i32 = arith.constant 2 : i32
    %0 = arith.muli %arg0, %c2_i32 : i32
    %1 = arith.addi %0, %arg1 : i32
    %c0_i32 = arith.constant 0 : i32
    %c0_i32_0 = arith.constant 0 : i32
    return %c0_i32, %1 : i32, i32
  }
  func.func @transform_4(%arg0: i32, %arg1: i32) -> (i32, i32, i32) {
    %c0_i32 = arith.constant 0 : i32
    %c0_i32_0 = arith.constant 0 : i32
    %c0_i32_1 = arith.constant 0 : i32
    return %arg0, %c0_i32, %c0_i32_0 : i32, i32, i32
  }
  func.func @transform_5(%arg0: i32, %arg1: i32) -> (i32, i32, i32) {
    %c0_i32 = arith.constant 0 : i32
    %c0_i32_0 = arith.constant 0 : i32
    %c0_i32_1 = arith.constant 0 : i32
    return %arg0, %c0_i32, %c0_i32_0 : i32, i32, i32
  }
}

module attributes {stable_mosaic.version = 11 : i64} {
  func.func @_gru_selu_kernel(%arg0: memref<8x128xbf16, #tpu.memory_space<vmem>>, %arg1: memref<128x384xbf16, #tpu.memory_space<vmem>>, %arg2: memref<128x384xbf16, #tpu.memory_space<vmem>>, %arg3: memref<1x384xf32, #tpu.memory_space<vmem>>, %arg4: memref<1x384xf32, #tpu.memory_space<vmem>>, %arg5: memref<8x128xbf16, #tpu.memory_space<vmem>>, %arg6: memref<8x384xf32, #tpu.memory_space<vmem>>, %arg7: memref<8x128xf32, #tpu.memory_space<vmem>>) attributes {dimension_semantics = [], scalar_prefetch = 0 : i64, scratch_operands = 2 : i64, tpu.core_type = #tpu.core_type<tc>} {
    %c0 = arith.constant 0 : index
    %c0_0 = arith.constant 0 : index
    %0 = vector.load %arg0[%c0, %c0_0] : memref<8x128xbf16, #tpu.memory_space<vmem>>, vector<8x128xbf16>
    %c0_1 = arith.constant 0 : index
    %c0_2 = arith.constant 0 : index
    %1 = vector.load %arg1[%c0_1, %c0_2] : memref<128x384xbf16, #tpu.memory_space<vmem>>, vector<128x384xbf16>
    %cst = arith.constant dense<0.000000e+00> : vector<8x384xf32>
    %2 = tpu.matmul %0, %1, %cst {dimension_numbers = #tpu.dot_dimension_numbers<[1], [0], [0], [1], [0, 0, 1, 1], [], []>} : vector<8x128xbf16>, vector<128x384xbf16>, vector<8x384xf32> -> vector<8x384xf32>
    %c0_3 = arith.constant 0 : index
    %c0_4 = arith.constant 0 : index
    %3 = vector.load %arg3[%c0_3, %c0_4] : memref<1x384xf32, #tpu.memory_space<vmem>>, vector<1x384xf32>
    %4 = vector.broadcast %3 : vector<1x384xf32> to vector<8x384xf32>
    %5 = arith.addf %2, %4 : vector<8x384xf32>
    %c0_5 = arith.constant 0 : index
    %c0_6 = arith.constant 0 : index
    %6 = vector.load %arg6[%c0_5, %c0_6] : memref<8x384xf32, #tpu.memory_space<vmem>>, vector<8x384xf32>
    tpu.vector_store %arg6[%c0_5, %c0_6], %5 {strides = array<i32>} : memref<8x384xf32, #tpu.memory_space<vmem>>, vector<8x384xf32>,
    %c0_7 = arith.constant 0 : index
    %c0_8 = arith.constant 0 : index
    %7 = vector.load %arg2[%c0_7, %c0_8] : memref<128x384xbf16, #tpu.memory_space<vmem>>, vector<128x384xbf16>
    %c0_9 = arith.constant 0 : index
    %c0_10 = arith.constant 0 : index
    %8 = vector.load %arg4[%c0_9, %c0_10] : memref<1x384xf32, #tpu.memory_space<vmem>>, vector<1x384xf32>
    %cst_11 = arith.constant 0.000000e+00 : f32
    %9 = vector.broadcast %cst_11 : f32 to vector<8x128xf32>
    %c0_12 = arith.constant 0 : index
    %c0_13 = arith.constant 0 : index
    %10 = vector.load %arg7[%c0_12, %c0_13] : memref<8x128xf32, #tpu.memory_space<vmem>>, vector<8x128xf32>
    tpu.vector_store %arg7[%c0_12, %c0_13], %9 {strides = array<i32>} : memref<8x128xf32, #tpu.memory_space<vmem>>, vector<8x128xf32>,
    %cst_14 = arith.constant 0.000000e+00 : f32
    %11 = vector.broadcast %cst_14 : f32 to vector<1x128xf32>
    %c0_i32 = arith.constant 0 : i32
    %12 = arith.index_cast %c0_i32 : i32 to index
    %c0_15 = arith.constant 0 : index
    %13 = vector.load %arg6[%12, %c0_15] : memref<8x384xf32, #tpu.memory_space<vmem>>, vector<1x384xf32>
    %14 = arith.truncf %11 : vector<1x128xf32> to vector<1x128xbf16>
    %cst_16 = arith.constant dense<0.000000e+00> : vector<1x384xf32>
    %15 = tpu.matmul %14, %7, %cst_16 {dimension_numbers = #tpu.dot_dimension_numbers<[1], [0], [0], [1], [0, 0, 1, 1], [], []>} : vector<1x128xbf16>, vector<128x384xbf16>, vector<1x384xf32> -> vector<1x384xf32>
    %16 = arith.addf %15, %8 : vector<1x384xf32>
    %17 = vector.extract_strided_slice %13 {offsets = [0, 0], sizes = [1, 128], strides = [1, 1]} : vector<1x384xf32> to vector<1x128xf32>
    %18 = vector.extract_strided_slice %13 {offsets = [0, 128], sizes = [1, 128], strides = [1, 1]} : vector<1x384xf32> to vector<1x128xf32>
    %19 = vector.extract_strided_slice %13 {offsets = [0, 256], sizes = [1, 128], strides = [1, 1]} : vector<1x384xf32> to vector<1x128xf32>
    %20 = vector.extract_strided_slice %16 {offsets = [0, 0], sizes = [1, 128], strides = [1, 1]} : vector<1x384xf32> to vector<1x128xf32>
    %21 = vector.extract_strided_slice %16 {offsets = [0, 128], sizes = [1, 128], strides = [1, 1]} : vector<1x384xf32> to vector<1x128xf32>
    %22 = vector.extract_strided_slice %16 {offsets = [0, 256], sizes = [1, 128], strides = [1, 1]} : vector<1x384xf32> to vector<1x128xf32>
    %23 = arith.addf %17, %20 : vector<1x128xf32>
    %24 = arith.negf %23 : vector<1x128xf32>
    %25 = math.exp %24 : vector<1x128xf32>
    %cst_17 = arith.constant 1.000000e+00 : f32
    %26 = vector.broadcast %cst_17 : f32 to vector<1x128xf32>
    %27 = arith.addf %26, %25 : vector<1x128xf32>
    %28 = arith.divf %26, %27 : vector<1x128xf32>
    %29 = arith.addf %18, %21 : vector<1x128xf32>
    %30 = arith.negf %29 : vector<1x128xf32>
    %31 = math.exp %30 : vector<1x128xf32>
    %cst_18 = arith.constant 1.000000e+00 : f32
    %32 = vector.broadcast %cst_18 : f32 to vector<1x128xf32>
    %33 = arith.addf %32, %31 : vector<1x128xf32>
    %34 = arith.divf %32, %33 : vector<1x128xf32>
    %35 = arith.mulf %28, %22 : vector<1x128xf32>
    %36 = arith.addf %19, %35 : vector<1x128xf32>
    %37 = math.tanh %36 : vector<1x128xf32>
    %cst_19 = arith.constant 1.000000e+00 : f32
    %38 = vector.broadcast %cst_19 : f32 to vector<1x128xf32>
    %39 = arith.subf %38, %34 : vector<1x128xf32>
    %40 = arith.mulf %39, %37 : vector<1x128xf32>
    %41 = arith.mulf %34, %11 : vector<1x128xf32>
    %42 = arith.addf %40, %41 : vector<1x128xf32>
    %cst_20 = arith.constant 0.000000e+00 : f32
    %43 = vector.broadcast %cst_20 : f32 to vector<1x128xf32>
    %44 = arith.cmpf ogt, %42, %43 : vector<1x128xf32>
    %45 = math.exp %42 : vector<1x128xf32>
    %cst_21 = arith.constant 1.000000e+00 : f32
    %46 = vector.broadcast %cst_21 : f32 to vector<1x128xf32>
    %47 = arith.subf %45, %46 : vector<1x128xf32>
    %cst_22 = arith.constant 1.67326319 : f32
    %48 = vector.broadcast %cst_22 : f32 to vector<1x128xf32>
    %49 = arith.mulf %48, %47 : vector<1x128xf32>
    %50 = arith.select %44, %42, %49 : vector<1x128xi1>, vector<1x128xf32>
    %cst_23 = arith.constant 1.05070102 : f32
    %51 = vector.broadcast %cst_23 : f32 to vector<1x128xf32>
    %52 = arith.mulf %51, %50 : vector<1x128xf32>
    %53 = arith.index_cast %c0_i32 : i32 to index
    %c0_24 = arith.constant 0 : index
    %54 = vector.load %arg7[%53, %c0_24] : memref<8x128xf32, #tpu.memory_space<vmem>>, vector<1x128xf32>
    tpu.vector_store %arg7[%53, %c0_24], %52 {strides = array<i32>} : memref<8x128xf32, #tpu.memory_space<vmem>>, vector<1x128xf32>,
    %c1_i32 = arith.constant 1 : i32
    %55 = arith.index_cast %c1_i32 : i32 to index
    %c0_25 = arith.constant 0 : index
    %56 = vector.load %arg6[%55, %c0_25] : memref<8x384xf32, #tpu.memory_space<vmem>>, vector<1x384xf32>
    %57 = arith.truncf %42 : vector<1x128xf32> to vector<1x128xbf16>
    %cst_26 = arith.constant dense<0.000000e+00> : vector<1x384xf32>
    %58 = tpu.matmul %57, %7, %cst_26 {dimension_numbers = #tpu.dot_dimension_numbers<[1], [0], [0], [1], [0, 0, 1, 1], [], []>} : vector<1x128xbf16>, vector<128x384xbf16>, vector<1x384xf32> -> vector<1x384xf32>
    %59 = arith.addf %58, %8 : vector<1x384xf32>
    %60 = vector.extract_strided_slice %56 {offsets = [0, 0], sizes = [1, 128], strides = [1, 1]} : vector<1x384xf32> to vector<1x128xf32>
    %61 = vector.extract_strided_slice %56 {offsets = [0, 128], sizes = [1, 128], strides = [1, 1]} : vector<1x384xf32> to vector<1x128xf32>
    %62 = vector.extract_strided_slice %56 {offsets = [0, 256], sizes = [1, 128], strides = [1, 1]} : vector<1x384xf32> to vector<1x128xf32>
    %63 = vector.extract_strided_slice %59 {offsets = [0, 0], sizes = [1, 128], strides = [1, 1]} : vector<1x384xf32> to vector<1x128xf32>
    %64 = vector.extract_strided_slice %59 {offsets = [0, 128], sizes = [1, 128], strides = [1, 1]} : vector<1x384xf32> to vector<1x128xf32>
    %65 = vector.extract_strided_slice %59 {offsets = [0, 256], sizes = [1, 128], strides = [1, 1]} : vector<1x384xf32> to vector<1x128xf32>
    %66 = arith.addf %60, %63 : vector<1x128xf32>
    %67 = arith.negf %66 : vector<1x128xf32>
    %68 = math.exp %67 : vector<1x128xf32>
    %cst_27 = arith.constant 1.000000e+00 : f32
    %69 = vector.broadcast %cst_27 : f32 to vector<1x128xf32>
    %70 = arith.addf %69, %68 : vector<1x128xf32>
    %71 = arith.divf %69, %70 : vector<1x128xf32>
    %72 = arith.addf %61, %64 : vector<1x128xf32>
    %73 = arith.negf %72 : vector<1x128xf32>
    %74 = math.exp %73 : vector<1x128xf32>
    %cst_28 = arith.constant 1.000000e+00 : f32
    %75 = vector.broadcast %cst_28 : f32 to vector<1x128xf32>
    %76 = arith.addf %75, %74 : vector<1x128xf32>
    %77 = arith.divf %75, %76 : vector<1x128xf32>
    %78 = arith.mulf %71, %65 : vector<1x128xf32>
    %79 = arith.addf %62, %78 : vector<1x128xf32>
    %80 = math.tanh %79 : vector<1x128xf32>
    %cst_29 = arith.constant 1.000000e+00 : f32
    %81 = vector.broadcast %cst_29 : f32 to vector<1x128xf32>
    %82 = arith.subf %81, %77 : vector<1x128xf32>
    %83 = arith.mulf %82, %80 : vector<1x128xf32>
    %84 = arith.mulf %77, %42 : vector<1x128xf32>
    %85 = arith.addf %83, %84 : vector<1x128xf32>
    %cst_30 = arith.constant 0.000000e+00 : f32
    %86 = vector.broadcast %cst_30 : f32 to vector<1x128xf32>
    %87 = arith.cmpf ogt, %85, %86 : vector<1x128xf32>
    %88 = math.exp %85 : vector<1x128xf32>
    %cst_31 = arith.constant 1.000000e+00 : f32
    %89 = vector.broadcast %cst_31 : f32 to vector<1x128xf32>
    %90 = arith.subf %88, %89 : vector<1x128xf32>
    %cst_32 = arith.constant 1.67326319 : f32
    %91 = vector.broadcast %cst_32 : f32 to vector<1x128xf32>
    %92 = arith.mulf %91, %90 : vector<1x128xf32>
    %93 = arith.select %87, %85, %92 : vector<1x128xi1>, vector<1x128xf32>
    %cst_33 = arith.constant 1.05070102 : f32
    %94 = vector.broadcast %cst_33 : f32 to vector<1x128xf32>
    %95 = arith.mulf %94, %93 : vector<1x128xf32>
    %96 = arith.index_cast %c1_i32 : i32 to index
    %c0_34 = arith.constant 0 : index
    %97 = vector.load %arg7[%96, %c0_34] : memref<8x128xf32, #tpu.memory_space<vmem>>, vector<1x128xf32>
    tpu.vector_store %arg7[%96, %c0_34], %95 {strides = array<i32>} : memref<8x128xf32, #tpu.memory_space<vmem>>, vector<1x128xf32>,
    %c2_i32 = arith.constant 2 : i32
    %98 = arith.index_cast %c2_i32 : i32 to index
    %c0_35 = arith.constant 0 : index
    %99 = vector.load %arg6[%98, %c0_35] : memref<8x384xf32, #tpu.memory_space<vmem>>, vector<1x384xf32>
    %100 = arith.truncf %85 : vector<1x128xf32> to vector<1x128xbf16>
    %cst_36 = arith.constant dense<0.000000e+00> : vector<1x384xf32>
    %101 = tpu.matmul %100, %7, %cst_36 {dimension_numbers = #tpu.dot_dimension_numbers<[1], [0], [0], [1], [0, 0, 1, 1], [], []>} : vector<1x128xbf16>, vector<128x384xbf16>, vector<1x384xf32> -> vector<1x384xf32>
    %102 = arith.addf %101, %8 : vector<1x384xf32>
    %103 = vector.extract_strided_slice %99 {offsets = [0, 0], sizes = [1, 128], strides = [1, 1]} : vector<1x384xf32> to vector<1x128xf32>
    %104 = vector.extract_strided_slice %99 {offsets = [0, 128], sizes = [1, 128], strides = [1, 1]} : vector<1x384xf32> to vector<1x128xf32>
    %105 = vector.extract_strided_slice %99 {offsets = [0, 256], sizes = [1, 128], strides = [1, 1]} : vector<1x384xf32> to vector<1x128xf32>
    %106 = vector.extract_strided_slice %102 {offsets = [0, 0], sizes = [1, 128], strides = [1, 1]} : vector<1x384xf32> to vector<1x128xf32>
    %107 = vector.extract_strided_slice %102 {offsets = [0, 128], sizes = [1, 128], strides = [1, 1]} : vector<1x384xf32> to vector<1x128xf32>
    %108 = vector.extract_strided_slice %102 {offsets = [0, 256], sizes = [1, 128], strides = [1, 1]} : vector<1x384xf32> to vector<1x128xf32>
    %109 = arith.addf %103, %106 : vector<1x128xf32>
    %110 = arith.negf %109 : vector<1x128xf32>
    %111 = math.exp %110 : vector<1x128xf32>
    %cst_37 = arith.constant 1.000000e+00 : f32
    %112 = vector.broadcast %cst_37 : f32 to vector<1x128xf32>
    %113 = arith.addf %112, %111 : vector<1x128xf32>
    %114 = arith.divf %112, %113 : vector<1x128xf32>
    %115 = arith.addf %104, %107 : vector<1x128xf32>
    %116 = arith.negf %115 : vector<1x128xf32>
    %117 = math.exp %116 : vector<1x128xf32>
    %cst_38 = arith.constant 1.000000e+00 : f32
    %118 = vector.broadcast %cst_38 : f32 to vector<1x128xf32>
    %119 = arith.addf %118, %117 : vector<1x128xf32>
    %120 = arith.divf %118, %119 : vector<1x128xf32>
    %121 = arith.mulf %114, %108 : vector<1x128xf32>
    %122 = arith.addf %105, %121 : vector<1x128xf32>
    %123 = math.tanh %122 : vector<1x128xf32>
    %cst_39 = arith.constant 1.000000e+00 : f32
    %124 = vector.broadcast %cst_39 : f32 to vector<1x128xf32>
    %125 = arith.subf %124, %120 : vector<1x128xf32>
    %126 = arith.mulf %125, %123 : vector<1x128xf32>
    %127 = arith.mulf %120, %85 : vector<1x128xf32>
    %128 = arith.addf %126, %127 : vector<1x128xf32>
    %cst_40 = arith.constant 0.000000e+00 : f32
    %129 = vector.broadcast %cst_40 : f32 to vector<1x128xf32>
    %130 = arith.cmpf ogt, %128, %129 : vector<1x128xf32>
    %131 = math.exp %128 : vector<1x128xf32>
    %cst_41 = arith.constant 1.000000e+00 : f32
    %132 = vector.broadcast %cst_41 : f32 to vector<1x128xf32>
    %133 = arith.subf %131, %132 : vector<1x128xf32>
    %cst_42 = arith.constant 1.67326319 : f32
    %134 = vector.broadcast %cst_42 : f32 to vector<1x128xf32>
    %135 = arith.mulf %134, %133 : vector<1x128xf32>
    %136 = arith.select %130, %128, %135 : vector<1x128xi1>, vector<1x128xf32>
    %cst_43 = arith.constant 1.05070102 : f32
    %137 = vector.broadcast %cst_43 : f32 to vector<1x128xf32>
    %138 = arith.mulf %137, %136 : vector<1x128xf32>
    %139 = arith.index_cast %c2_i32 : i32 to index
    %c0_44 = arith.constant 0 : index
    %140 = vector.load %arg7[%139, %c0_44] : memref<8x128xf32, #tpu.memory_space<vmem>>, vector<1x128xf32>
    tpu.vector_store %arg7[%139, %c0_44], %138 {strides = array<i32>} : memref<8x128xf32, #tpu.memory_space<vmem>>, vector<1x128xf32>,
    %c3_i32 = arith.constant 3 : i32
    %141 = arith.index_cast %c3_i32 : i32 to index
    %c0_45 = arith.constant 0 : index
    %142 = vector.load %arg6[%141, %c0_45] : memref<8x384xf32, #tpu.memory_space<vmem>>, vector<1x384xf32>
    %143 = arith.truncf %128 : vector<1x128xf32> to vector<1x128xbf16>
    %cst_46 = arith.constant dense<0.000000e+00> : vector<1x384xf32>
    %144 = tpu.matmul %143, %7, %cst_46 {dimension_numbers = #tpu.dot_dimension_numbers<[1], [0], [0], [1], [0, 0, 1, 1], [], []>} : vector<1x128xbf16>, vector<128x384xbf16>, vector<1x384xf32> -> vector<1x384xf32>
    %145 = arith.addf %144, %8 : vector<1x384xf32>
    %146 = vector.extract_strided_slice %142 {offsets = [0, 0], sizes = [1, 128], strides = [1, 1]} : vector<1x384xf32> to vector<1x128xf32>
    %147 = vector.extract_strided_slice %142 {offsets = [0, 128], sizes = [1, 128], strides = [1, 1]} : vector<1x384xf32> to vector<1x128xf32>
    %148 = vector.extract_strided_slice %142 {offsets = [0, 256], sizes = [1, 128], strides = [1, 1]} : vector<1x384xf32> to vector<1x128xf32>
    %149 = vector.extract_strided_slice %145 {offsets = [0, 0], sizes = [1, 128], strides = [1, 1]} : vector<1x384xf32> to vector<1x128xf32>
    %150 = vector.extract_strided_slice %145 {offsets = [0, 128], sizes = [1, 128], strides = [1, 1]} : vector<1x384xf32> to vector<1x128xf32>
    %151 = vector.extract_strided_slice %145 {offsets = [0, 256], sizes = [1, 128], strides = [1, 1]} : vector<1x384xf32> to vector<1x128xf32>
    %152 = arith.addf %146, %149 : vector<1x128xf32>
    %153 = arith.negf %152 : vector<1x128xf32>
    %154 = math.exp %153 : vector<1x128xf32>
    %cst_47 = arith.constant 1.000000e+00 : f32
    %155 = vector.broadcast %cst_47 : f32 to vector<1x128xf32>
    %156 = arith.addf %155, %154 : vector<1x128xf32>
    %157 = arith.divf %155, %156 : vector<1x128xf32>
    %158 = arith.addf %147, %150 : vector<1x128xf32>
    %159 = arith.negf %158 : vector<1x128xf32>
    %160 = math.exp %159 : vector<1x128xf32>
    %cst_48 = arith.constant 1.000000e+00 : f32
    %161 = vector.broadcast %cst_48 : f32 to vector<1x128xf32>
    %162 = arith.addf %161, %160 : vector<1x128xf32>
    %163 = arith.divf %161, %162 : vector<1x128xf32>
    %164 = arith.mulf %157, %151 : vector<1x128xf32>
    %165 = arith.addf %148, %164 : vector<1x128xf32>
    %166 = math.tanh %165 : vector<1x128xf32>
    %cst_49 = arith.constant 1.000000e+00 : f32
    %167 = vector.broadcast %cst_49 : f32 to vector<1x128xf32>
    %168 = arith.subf %167, %163 : vector<1x128xf32>
    %169 = arith.mulf %168, %166 : vector<1x128xf32>
    %170 = arith.mulf %163, %128 : vector<1x128xf32>
    %171 = arith.addf %169, %170 : vector<1x128xf32>
    %cst_50 = arith.constant 0.000000e+00 : f32
    %172 = vector.broadcast %cst_50 : f32 to vector<1x128xf32>
    %173 = arith.cmpf ogt, %171, %172 : vector<1x128xf32>
    %174 = math.exp %171 : vector<1x128xf32>
    %cst_51 = arith.constant 1.000000e+00 : f32
    %175 = vector.broadcast %cst_51 : f32 to vector<1x128xf32>
    %176 = arith.subf %174, %175 : vector<1x128xf32>
    %cst_52 = arith.constant 1.67326319 : f32
    %177 = vector.broadcast %cst_52 : f32 to vector<1x128xf32>
    %178 = arith.mulf %177, %176 : vector<1x128xf32>
    %179 = arith.select %173, %171, %178 : vector<1x128xi1>, vector<1x128xf32>
    %cst_53 = arith.constant 1.05070102 : f32
    %180 = vector.broadcast %cst_53 : f32 to vector<1x128xf32>
    %181 = arith.mulf %180, %179 : vector<1x128xf32>
    %182 = arith.index_cast %c3_i32 : i32 to index
    %c0_54 = arith.constant 0 : index
    %183 = vector.load %arg7[%182, %c0_54] : memref<8x128xf32, #tpu.memory_space<vmem>>, vector<1x128xf32>
    tpu.vector_store %arg7[%182, %c0_54], %181 {strides = array<i32>} : memref<8x128xf32, #tpu.memory_space<vmem>>, vector<1x128xf32>,
    %c4_i32 = arith.constant 4 : i32
    %184 = arith.index_cast %c4_i32 : i32 to index
    %c0_55 = arith.constant 0 : index
    %185 = vector.load %arg6[%184, %c0_55] : memref<8x384xf32, #tpu.memory_space<vmem>>, vector<1x384xf32>
    %186 = arith.truncf %171 : vector<1x128xf32> to vector<1x128xbf16>
    %cst_56 = arith.constant dense<0.000000e+00> : vector<1x384xf32>
    %187 = tpu.matmul %186, %7, %cst_56 {dimension_numbers = #tpu.dot_dimension_numbers<[1], [0], [0], [1], [0, 0, 1, 1], [], []>} : vector<1x128xbf16>, vector<128x384xbf16>, vector<1x384xf32> -> vector<1x384xf32>
    %188 = arith.addf %187, %8 : vector<1x384xf32>
    %189 = vector.extract_strided_slice %185 {offsets = [0, 0], sizes = [1, 128], strides = [1, 1]} : vector<1x384xf32> to vector<1x128xf32>
    %190 = vector.extract_strided_slice %185 {offsets = [0, 128], sizes = [1, 128], strides = [1, 1]} : vector<1x384xf32> to vector<1x128xf32>
    %191 = vector.extract_strided_slice %185 {offsets = [0, 256], sizes = [1, 128], strides = [1, 1]} : vector<1x384xf32> to vector<1x128xf32>
    %192 = vector.extract_strided_slice %188 {offsets = [0, 0], sizes = [1, 128], strides = [1, 1]} : vector<1x384xf32> to vector<1x128xf32>
    %193 = vector.extract_strided_slice %188 {offsets = [0, 128], sizes = [1, 128], strides = [1, 1]} : vector<1x384xf32> to vector<1x128xf32>
    %194 = vector.extract_strided_slice %188 {offsets = [0, 256], sizes = [1, 128], strides = [1, 1]} : vector<1x384xf32> to vector<1x128xf32>
    %195 = arith.addf %189, %192 : vector<1x128xf32>
    %196 = arith.negf %195 : vector<1x128xf32>
    %197 = math.exp %196 : vector<1x128xf32>
    %cst_57 = arith.constant 1.000000e+00 : f32
    %198 = vector.broadcast %cst_57 : f32 to vector<1x128xf32>
    %199 = arith.addf %198, %197 : vector<1x128xf32>
    %200 = arith.divf %198, %199 : vector<1x128xf32>
    %201 = arith.addf %190, %193 : vector<1x128xf32>
    %202 = arith.negf %201 : vector<1x128xf32>
    %203 = math.exp %202 : vector<1x128xf32>
    %cst_58 = arith.constant 1.000000e+00 : f32
    %204 = vector.broadcast %cst_58 : f32 to vector<1x128xf32>
    %205 = arith.addf %204, %203 : vector<1x128xf32>
    %206 = arith.divf %204, %205 : vector<1x128xf32>
    %207 = arith.mulf %200, %194 : vector<1x128xf32>
    %208 = arith.addf %191, %207 : vector<1x128xf32>
    %209 = math.tanh %208 : vector<1x128xf32>
    %cst_59 = arith.constant 1.000000e+00 : f32
    %210 = vector.broadcast %cst_59 : f32 to vector<1x128xf32>
    %211 = arith.subf %210, %206 : vector<1x128xf32>
    %212 = arith.mulf %211, %209 : vector<1x128xf32>
    %213 = arith.mulf %206, %171 : vector<1x128xf32>
    %214 = arith.addf %212, %213 : vector<1x128xf32>
    %cst_60 = arith.constant 0.000000e+00 : f32
    %215 = vector.broadcast %cst_60 : f32 to vector<1x128xf32>
    %216 = arith.cmpf ogt, %214, %215 : vector<1x128xf32>
    %217 = math.exp %214 : vector<1x128xf32>
    %cst_61 = arith.constant 1.000000e+00 : f32
    %218 = vector.broadcast %cst_61 : f32 to vector<1x128xf32>
    %219 = arith.subf %217, %218 : vector<1x128xf32>
    %cst_62 = arith.constant 1.67326319 : f32
    %220 = vector.broadcast %cst_62 : f32 to vector<1x128xf32>
    %221 = arith.mulf %220, %219 : vector<1x128xf32>
    %222 = arith.select %216, %214, %221 : vector<1x128xi1>, vector<1x128xf32>
    %cst_63 = arith.constant 1.05070102 : f32
    %223 = vector.broadcast %cst_63 : f32 to vector<1x128xf32>
    %224 = arith.mulf %223, %222 : vector<1x128xf32>
    %225 = arith.index_cast %c4_i32 : i32 to index
    %c0_64 = arith.constant 0 : index
    %226 = vector.load %arg7[%225, %c0_64] : memref<8x128xf32, #tpu.memory_space<vmem>>, vector<1x128xf32>
    tpu.vector_store %arg7[%225, %c0_64], %224 {strides = array<i32>} : memref<8x128xf32, #tpu.memory_space<vmem>>, vector<1x128xf32>,
    %c5_i32 = arith.constant 5 : i32
    %227 = arith.index_cast %c5_i32 : i32 to index
    %c0_65 = arith.constant 0 : index
    %228 = vector.load %arg6[%227, %c0_65] : memref<8x384xf32, #tpu.memory_space<vmem>>, vector<1x384xf32>
    %229 = arith.truncf %214 : vector<1x128xf32> to vector<1x128xbf16>
    %cst_66 = arith.constant dense<0.000000e+00> : vector<1x384xf32>
    %230 = tpu.matmul %229, %7, %cst_66 {dimension_numbers = #tpu.dot_dimension_numbers<[1], [0], [0], [1], [0, 0, 1, 1], [], []>} : vector<1x128xbf16>, vector<128x384xbf16>, vector<1x384xf32> -> vector<1x384xf32>
    %231 = arith.addf %230, %8 : vector<1x384xf32>
    %232 = vector.extract_strided_slice %228 {offsets = [0, 0], sizes = [1, 128], strides = [1, 1]} : vector<1x384xf32> to vector<1x128xf32>
    %233 = vector.extract_strided_slice %228 {offsets = [0, 128], sizes = [1, 128], strides = [1, 1]} : vector<1x384xf32> to vector<1x128xf32>
    %234 = vector.extract_strided_slice %228 {offsets = [0, 256], sizes = [1, 128], strides = [1, 1]} : vector<1x384xf32> to vector<1x128xf32>
    %235 = vector.extract_strided_slice %231 {offsets = [0, 0], sizes = [1, 128], strides = [1, 1]} : vector<1x384xf32> to vector<1x128xf32>
    %236 = vector.extract_strided_slice %231 {offsets = [0, 128], sizes = [1, 128], strides = [1, 1]} : vector<1x384xf32> to vector<1x128xf32>
    %237 = vector.extract_strided_slice %231 {offsets = [0, 256], sizes = [1, 128], strides = [1, 1]} : vector<1x384xf32> to vector<1x128xf32>
    %238 = arith.addf %232, %235 : vector<1x128xf32>
    %239 = arith.negf %238 : vector<1x128xf32>
    %240 = math.exp %239 : vector<1x128xf32>
    %cst_67 = arith.constant 1.000000e+00 : f32
    %241 = vector.broadcast %cst_67 : f32 to vector<1x128xf32>
    %242 = arith.addf %241, %240 : vector<1x128xf32>
    %243 = arith.divf %241, %242 : vector<1x128xf32>
    %244 = arith.addf %233, %236 : vector<1x128xf32>
    %245 = arith.negf %244 : vector<1x128xf32>
    %246 = math.exp %245 : vector<1x128xf32>
    %cst_68 = arith.constant 1.000000e+00 : f32
    %247 = vector.broadcast %cst_68 : f32 to vector<1x128xf32>
    %248 = arith.addf %247, %246 : vector<1x128xf32>
    %249 = arith.divf %247, %248 : vector<1x128xf32>
    %250 = arith.mulf %243, %237 : vector<1x128xf32>
    %251 = arith.addf %234, %250 : vector<1x128xf32>
    %252 = math.tanh %251 : vector<1x128xf32>
    %cst_69 = arith.constant 1.000000e+00 : f32
    %253 = vector.broadcast %cst_69 : f32 to vector<1x128xf32>
    %254 = arith.subf %253, %249 : vector<1x128xf32>
    %255 = arith.mulf %254, %252 : vector<1x128xf32>
    %256 = arith.mulf %249, %214 : vector<1x128xf32>
    %257 = arith.addf %255, %256 : vector<1x128xf32>
    %cst_70 = arith.constant 0.000000e+00 : f32
    %258 = vector.broadcast %cst_70 : f32 to vector<1x128xf32>
    %259 = arith.cmpf ogt, %257, %258 : vector<1x128xf32>
    %260 = math.exp %257 : vector<1x128xf32>
    %cst_71 = arith.constant 1.000000e+00 : f32
    %261 = vector.broadcast %cst_71 : f32 to vector<1x128xf32>
    %262 = arith.subf %260, %261 : vector<1x128xf32>
    %cst_72 = arith.constant 1.67326319 : f32
    %263 = vector.broadcast %cst_72 : f32 to vector<1x128xf32>
    %264 = arith.mulf %263, %262 : vector<1x128xf32>
    %265 = arith.select %259, %257, %264 : vector<1x128xi1>, vector<1x128xf32>
    %cst_73 = arith.constant 1.05070102 : f32
    %266 = vector.broadcast %cst_73 : f32 to vector<1x128xf32>
    %267 = arith.mulf %266, %265 : vector<1x128xf32>
    %268 = arith.index_cast %c5_i32 : i32 to index
    %c0_74 = arith.constant 0 : index
    %269 = vector.load %arg7[%268, %c0_74] : memref<8x128xf32, #tpu.memory_space<vmem>>, vector<1x128xf32>
    tpu.vector_store %arg7[%268, %c0_74], %267 {strides = array<i32>} : memref<8x128xf32, #tpu.memory_space<vmem>>, vector<1x128xf32>,
    %c6_i32 = arith.constant 6 : i32
    %270 = arith.index_cast %c6_i32 : i32 to index
    %c0_75 = arith.constant 0 : index
    %271 = vector.load %arg6[%270, %c0_75] : memref<8x384xf32, #tpu.memory_space<vmem>>, vector<1x384xf32>
    %272 = arith.truncf %257 : vector<1x128xf32> to vector<1x128xbf16>
    %cst_76 = arith.constant dense<0.000000e+00> : vector<1x384xf32>
    %273 = tpu.matmul %272, %7, %cst_76 {dimension_numbers = #tpu.dot_dimension_numbers<[1], [0], [0], [1], [0, 0, 1, 1], [], []>} : vector<1x128xbf16>, vector<128x384xbf16>, vector<1x384xf32> -> vector<1x384xf32>
    %274 = arith.addf %273, %8 : vector<1x384xf32>
    %275 = vector.extract_strided_slice %271 {offsets = [0, 0], sizes = [1, 128], strides = [1, 1]} : vector<1x384xf32> to vector<1x128xf32>
    %276 = vector.extract_strided_slice %271 {offsets = [0, 128], sizes = [1, 128], strides = [1, 1]} : vector<1x384xf32> to vector<1x128xf32>
    %277 = vector.extract_strided_slice %271 {offsets = [0, 256], sizes = [1, 128], strides = [1, 1]} : vector<1x384xf32> to vector<1x128xf32>
    %278 = vector.extract_strided_slice %274 {offsets = [0, 0], sizes = [1, 128], strides = [1, 1]} : vector<1x384xf32> to vector<1x128xf32>
    %279 = vector.extract_strided_slice %274 {offsets = [0, 128], sizes = [1, 128], strides = [1, 1]} : vector<1x384xf32> to vector<1x128xf32>
    %280 = vector.extract_strided_slice %274 {offsets = [0, 256], sizes = [1, 128], strides = [1, 1]} : vector<1x384xf32> to vector<1x128xf32>
    %281 = arith.addf %275, %278 : vector<1x128xf32>
    %282 = arith.negf %281 : vector<1x128xf32>
    %283 = math.exp %282 : vector<1x128xf32>
    %cst_77 = arith.constant 1.000000e+00 : f32
    %284 = vector.broadcast %cst_77 : f32 to vector<1x128xf32>
    %285 = arith.addf %284, %283 : vector<1x128xf32>
    %286 = arith.divf %284, %285 : vector<1x128xf32>
    %287 = arith.addf %276, %279 : vector<1x128xf32>
    %288 = arith.negf %287 : vector<1x128xf32>
    %289 = math.exp %288 : vector<1x128xf32>
    %cst_78 = arith.constant 1.000000e+00 : f32
    %290 = vector.broadcast %cst_78 : f32 to vector<1x128xf32>
    %291 = arith.addf %290, %289 : vector<1x128xf32>
    %292 = arith.divf %290, %291 : vector<1x128xf32>
    %293 = arith.mulf %286, %280 : vector<1x128xf32>
    %294 = arith.addf %277, %293 : vector<1x128xf32>
    %295 = math.tanh %294 : vector<1x128xf32>
    %cst_79 = arith.constant 1.000000e+00 : f32
    %296 = vector.broadcast %cst_79 : f32 to vector<1x128xf32>
    %297 = arith.subf %296, %292 : vector<1x128xf32>
    %298 = arith.mulf %297, %295 : vector<1x128xf32>
    %299 = arith.mulf %292, %257 : vector<1x128xf32>
    %300 = arith.addf %298, %299 : vector<1x128xf32>
    %cst_80 = arith.constant 0.000000e+00 : f32
    %301 = vector.broadcast %cst_80 : f32 to vector<1x128xf32>
    %302 = arith.cmpf ogt, %300, %301 : vector<1x128xf32>
    %303 = math.exp %300 : vector<1x128xf32>
    %cst_81 = arith.constant 1.000000e+00 : f32
    %304 = vector.broadcast %cst_81 : f32 to vector<1x128xf32>
    %305 = arith.subf %303, %304 : vector<1x128xf32>
    %cst_82 = arith.constant 1.67326319 : f32
    %306 = vector.broadcast %cst_82 : f32 to vector<1x128xf32>
    %307 = arith.mulf %306, %305 : vector<1x128xf32>
    %308 = arith.select %302, %300, %307 : vector<1x128xi1>, vector<1x128xf32>
    %cst_83 = arith.constant 1.05070102 : f32
    %309 = vector.broadcast %cst_83 : f32 to vector<1x128xf32>
    %310 = arith.mulf %309, %308 : vector<1x128xf32>
    %311 = arith.index_cast %c6_i32 : i32 to index
    %c0_84 = arith.constant 0 : index
    %312 = vector.load %arg7[%311, %c0_84] : memref<8x128xf32, #tpu.memory_space<vmem>>, vector<1x128xf32>
    tpu.vector_store %arg7[%311, %c0_84], %310 {strides = array<i32>} : memref<8x128xf32, #tpu.memory_space<vmem>>, vector<1x128xf32>,
    %c7_i32 = arith.constant 7 : i32
    %313 = arith.index_cast %c7_i32 : i32 to index
    %c0_85 = arith.constant 0 : index
    %314 = vector.load %arg6[%313, %c0_85] : memref<8x384xf32, #tpu.memory_space<vmem>>, vector<1x384xf32>
    %315 = arith.truncf %300 : vector<1x128xf32> to vector<1x128xbf16>
    %cst_86 = arith.constant dense<0.000000e+00> : vector<1x384xf32>
    %316 = tpu.matmul %315, %7, %cst_86 {dimension_numbers = #tpu.dot_dimension_numbers<[1], [0], [0], [1], [0, 0, 1, 1], [], []>} : vector<1x128xbf16>, vector<128x384xbf16>, vector<1x384xf32> -> vector<1x384xf32>
    %317 = arith.addf %316, %8 : vector<1x384xf32>
    %318 = vector.extract_strided_slice %314 {offsets = [0, 0], sizes = [1, 128], strides = [1, 1]} : vector<1x384xf32> to vector<1x128xf32>
    %319 = vector.extract_strided_slice %314 {offsets = [0, 128], sizes = [1, 128], strides = [1, 1]} : vector<1x384xf32> to vector<1x128xf32>
    %320 = vector.extract_strided_slice %314 {offsets = [0, 256], sizes = [1, 128], strides = [1, 1]} : vector<1x384xf32> to vector<1x128xf32>
    %321 = vector.extract_strided_slice %317 {offsets = [0, 0], sizes = [1, 128], strides = [1, 1]} : vector<1x384xf32> to vector<1x128xf32>
    %322 = vector.extract_strided_slice %317 {offsets = [0, 128], sizes = [1, 128], strides = [1, 1]} : vector<1x384xf32> to vector<1x128xf32>
    %323 = vector.extract_strided_slice %317 {offsets = [0, 256], sizes = [1, 128], strides = [1, 1]} : vector<1x384xf32> to vector<1x128xf32>
    %324 = arith.addf %318, %321 : vector<1x128xf32>
    %325 = arith.negf %324 : vector<1x128xf32>
    %326 = math.exp %325 : vector<1x128xf32>
    %cst_87 = arith.constant 1.000000e+00 : f32
    %327 = vector.broadcast %cst_87 : f32 to vector<1x128xf32>
    %328 = arith.addf %327, %326 : vector<1x128xf32>
    %329 = arith.divf %327, %328 : vector<1x128xf32>
    %330 = arith.addf %319, %322 : vector<1x128xf32>
    %331 = arith.negf %330 : vector<1x128xf32>
    %332 = math.exp %331 : vector<1x128xf32>
    %cst_88 = arith.constant 1.000000e+00 : f32
    %333 = vector.broadcast %cst_88 : f32 to vector<1x128xf32>
    %334 = arith.addf %333, %332 : vector<1x128xf32>
    %335 = arith.divf %333, %334 : vector<1x128xf32>
    %336 = arith.mulf %329, %323 : vector<1x128xf32>
    %337 = arith.addf %320, %336 : vector<1x128xf32>
    %338 = math.tanh %337 : vector<1x128xf32>
    %cst_89 = arith.constant 1.000000e+00 : f32
    %339 = vector.broadcast %cst_89 : f32 to vector<1x128xf32>
    %340 = arith.subf %339, %335 : vector<1x128xf32>
    %341 = arith.mulf %340, %338 : vector<1x128xf32>
    %342 = arith.mulf %335, %300 : vector<1x128xf32>
    %343 = arith.addf %341, %342 : vector<1x128xf32>
    %cst_90 = arith.constant 0.000000e+00 : f32
    %344 = vector.broadcast %cst_90 : f32 to vector<1x128xf32>
    %345 = arith.cmpf ogt, %343, %344 : vector<1x128xf32>
    %346 = math.exp %343 : vector<1x128xf32>
    %cst_91 = arith.constant 1.000000e+00 : f32
    %347 = vector.broadcast %cst_91 : f32 to vector<1x128xf32>
    %348 = arith.subf %346, %347 : vector<1x128xf32>
    %cst_92 = arith.constant 1.67326319 : f32
    %349 = vector.broadcast %cst_92 : f32 to vector<1x128xf32>
    %350 = arith.mulf %349, %348 : vector<1x128xf32>
    %351 = arith.select %345, %343, %350 : vector<1x128xi1>, vector<1x128xf32>
    %cst_93 = arith.constant 1.05070102 : f32
    %352 = vector.broadcast %cst_93 : f32 to vector<1x128xf32>
    %353 = arith.mulf %352, %351 : vector<1x128xf32>
    %354 = arith.index_cast %c7_i32 : i32 to index
    %c0_94 = arith.constant 0 : index
    %355 = vector.load %arg7[%354, %c0_94] : memref<8x128xf32, #tpu.memory_space<vmem>>, vector<1x128xf32>
    tpu.vector_store %arg7[%354, %c0_94], %353 {strides = array<i32>} : memref<8x128xf32, #tpu.memory_space<vmem>>, vector<1x128xf32>,
    %c8_i32 = arith.constant 8 : i32
    %c0_95 = arith.constant 0 : index
    %c0_96 = arith.constant 0 : index
    %356 = vector.load %arg7[%c0_95, %c0_96] : memref<8x128xf32, #tpu.memory_space<vmem>>, vector<8x128xf32>
    %357 = arith.truncf %356 : vector<8x128xf32> to vector<8x128xbf16>
    %c0_97 = arith.constant 0 : index
    %c0_98 = arith.constant 0 : index
    %358 = vector.load %arg5[%c0_97, %c0_98] : memref<8x128xbf16, #tpu.memory_space<vmem>>, vector<8x128xbf16>
    tpu.vector_store %arg5[%c0_97, %c0_98], %357 {strides = array<i32>} : memref<8x128xbf16, #tpu.memory_space<vmem>>, vector<8x128xbf16>,
    return
  }
}

module attributes {stable_mosaic.version = 11 : i64} {
  func.func @_normalize_kernel(%arg0: i32, %arg1: memref<8x128xf32, #tpu.memory_space<vmem>>, %arg2: memref<8x1xf32, #tpu.memory_space<vmem>>, %arg3: memref<8x128xf32, #tpu.memory_space<vmem>>) attributes {dimension_semantics = [#tpu.dimension_semantics<parallel>], iteration_bounds = array<i64: 4>, scalar_prefetch = 0 : i64, scratch_operands = 0 : i64, tpu.core_type = #tpu.core_type<tc>, window_params = [{transform_indices = @transform_0, window_bounds = array<i64: 8, 128>}, {pipeline_mode = #tpu.pipeline_mode<synchronous>, transform_indices = @transform_1, window_bounds = array<i64: 8, 1>}, {transform_indices = @transform_2, window_bounds = array<i64: 8, 128>}]} {
    %c0 = arith.constant 0 : index
    %c0_0 = arith.constant 0 : index
    %0 = vector.load %arg1[%c0, %c0_0] : memref<8x128xf32, #tpu.memory_space<vmem>>, vector<8x128xf32>
    %c0_1 = arith.constant 0 : index
    %c0_2 = arith.constant 0 : index
    %1 = vector.load %arg2[%c0_1, %c0_2] : memref<8x1xf32, #tpu.memory_space<vmem>>, vector<8x1xf32>
    %2 = vector.broadcast %1 : vector<8x1xf32> to vector<8x128xf32>
    %3 = arith.subf %0, %2 : vector<8x128xf32>
    %c0_3 = arith.constant 0 : index
    %c0_4 = arith.constant 0 : index
    %4 = vector.load %arg3[%c0_3, %c0_4] : memref<8x128xf32, #tpu.memory_space<vmem>>, vector<8x128xf32>
    tpu.vector_store %arg3[%c0_3, %c0_4], %3 {strides = array<i32>} : memref<8x128xf32, #tpu.memory_space<vmem>>, vector<8x128xf32>,
    return
  }
  func.func @transform_0(%arg0: i32) -> (i32, i32) {
    %c0_i32 = arith.constant 0 : i32
    %c0_i32_0 = arith.constant 0 : i32
    return %c0_i32, %arg0 : i32, i32
  }
  func.func @transform_1(%arg0: i32) -> (i32, i32) {
    %c0_i32 = arith.constant 0 : i32
    %c0_i32_0 = arith.constant 0 : i32
    %c0_i32_1 = arith.constant 0 : i32
    return %c0_i32, %c0_i32_0 : i32, i32
  }
  func.func @transform_2(%arg0: i32) -> (i32, i32) {
    %c0_i32 = arith.constant 0 : i32
    %c0_i32_0 = arith.constant 0 : i32
    return %c0_i32, %arg0 : i32, i32
  }
}

</mosaic_0001>

<llo_original>
// kernel: traj_pre_simple.5
$region0: #{traj_pre_simple.5}
  #allocation0 [shape = 'u32[]', space=smem, size = 0x4, offset = 0x4, fixed_abs, tag = 'smem constant byte address 0x4 - core index']
  #allocation1 [shape = 'u32[72,128]{1,0:T(1,128)}', space=vmem, size = 0x9000, scoped, tag = 'internal scratch']
  %s0 = inlined_call_operand.vmem [shape: f32[8,512], index: 0, kind: input, shape index: {}, may-alias: {0,2}]
  %s1 = inlined_call_operand.vmem [shape: f32[8,1], index: 1, kind: input, shape index: {}]
  %s2 = inlined_call_operand.vmem [shape: f32[8,512], index: 2, kind: output, shape index: {}, may-alias: {0,2}]
  %s3 = sld [smem:[#allocation0]]
  $region41: #{traj_pre_simple.5} parent=0
    _
  %s5 = ssub.s32 1, %s3
  %s6 = scalar_select 0, %s5, %s3
  loop: start=0, step=1, limit=6
  $region2: #{traj_pre_simple.5} parent=0 // loop_pre_header
    _
  $region3: #{traj_pre_simple.5} parent=0 // loop_header
    %s8 = sphi 0, %s12
    %p9 = scmp.ge.s32.totalorder %s8, 6
    %s18 = sphi 0, %s20
    %s21 = sphi 0, %s18
    %s22 = sphi 0, %s21
    %s38 = sphi 0, %s22
    %s42 = sphi 0, %s42
    %s44 = sphi 0, %s42
    %s45 = sphi 0, %s44
    %s59 = sphi 0, %s45
    %s65 = sphi 0, %s67
    %s68 = sphi 0, %s65
    %s69 = sphi 0, %s68
    %s85 = sphi 0, %s69
  $region4: #{traj_pre_simple.5} parent=0 // loop_header_branch
    %11 = sbr.rel (%p9) target = $region8
  $region5: #{traj_pre_simple.5} parent=0 // loop_body
    %s13 = ssub.s32 %s8, 1
    %s14 = ssub.s32 %s8, 2
    %s15 = sadd.s32 %s8, 1
    %s16 = ssub.s32 %s8, %s15
    %p17 = scmp.eq.s32.totalorder %s16, 0
    %s19 = sadd.s32 %s18, 1
    %s20 = scalar_select %p17, %s18, %s19
    %p23 = pneg %p17
    %p24 = scmp.eq.s32.totalorder %s8, 3
    %p25 = por %p23, %p24
    %p26 = scmp.ne.s32.totalorder %s18, %s21
    %p27 = scmp.eq.s32.totalorder %s8, 0
    %p28 = por %p26, %p27
    %p29 = scmp.ne.s32.totalorder %s18, %s21
    %p30 = scmp.eq.s32.totalorder %s13, 3
    %p31 = por %p29, %p30
    %p32 = scmp.ne.s32.totalorder %s21, %s22
    %p33 = scmp.eq.s32.totalorder %s13, 0
    %p34 = por %p32, %p33
    %p35 = scmp.ne.s32.totalorder %s21, %s22
    %p36 = scmp.eq.s32.totalorder %s14, 3
    %p37 = por %p35, %p36
    %p39 = scmp.ne.s32.totalorder %s22, %s38
    %p40 = scmp.eq.s32.totalorder %s14, 0
    %p41 = por %p39, %p40
    %s43 = sadd.s32 %s42, 1
    %p46 = scmp.eq.s32.totalorder %s8, 3
    %p47 = scmp.ne.s32.totalorder %s42, %s44
    %p48 = scmp.eq.s32.totalorder %s8, 0
    %p49 = por %p47, %p48
    %p50 = scmp.ne.s32.totalorder %s42, %s44
    %p51 = scmp.eq.s32.totalorder %s13, 3
    %p52 = por %p50, %p51
    %p53 = scmp.ne.s32.totalorder %s44, %s45
    %p54 = scmp.eq.s32.totalorder %s13, 0
    %p55 = por %p53, %p54
    %p56 = scmp.ne.s32.totalorder %s44, %s45
    %p57 = scmp.eq.s32.totalorder %s14, 3
    %p58 = por %p56, %p57
    %p60 = scmp.ne.s32.totalorder %s45, %s59
    %p61 = scmp.eq.s32.totalorder %s14, 0
    %p62 = por %p60, %p61
    %s63 = ssub.s32 %s8, %s15
    %p64 = scmp.eq.s32.totalorder %s63, 0
    %s66 = sadd.s32 %s65, 1
    %s67 = scalar_select %p64, %s65, %s66
    %p70 = pneg %p64
    %p71 = scmp.eq.s32.totalorder %s8, 3
    %p72 = por %p70, %p71
    %p73 = scmp.ne.s32.totalorder %s65, %s68
    %p74 = scmp.eq.s32.totalorder %s8, 0
    %p75 = por %p73, %p74
    %p76 = scmp.ne.s32.totalorder %s65, %s68
    %p77 = scmp.eq.s32.totalorder %s13, 3
    %p78 = por %p76, %p77
    %p79 = scmp.ne.s32.totalorder %s68, %s69
    %p80 = scmp.eq.s32.totalorder %s13, 0
    %p81 = por %p79, %p80
    %p82 = scmp.ne.s32.totalorder %s68, %s69
    %p83 = scmp.eq.s32.totalorder %s14, 3
    %p84 = por %p82, %p83
    %p86 = scmp.ne.s32.totalorder %s69, %s85
    %p87 = scmp.eq.s32.totalorder %s14, 0
    %p88 = por %p86, %p87
    %p89 = scmp.le.s32.totalorder 1, %s8
    %p90 = scmp.lt.s32.totalorder %s8, 5
    %p91 = pnand %p89, %p90
    %p92 = pneg %p91
    // Predicated region
    $region9: #{traj_pre_simple.5} parent=5 // pred_check
      _
    $region10: #{traj_pre_simple.5} parent=5 // pred_check_branch
      %94 = sbr.rel (%p91) target = $region12
    $region11: #{traj_pre_simple.5} parent=5 // pred_region
      %s95 = ssub.s32 %s8, 1
      // Predicated region
      $region13: #{traj_pre_simple.5} parent=11 // pred_check
        %p96 = pneg %p55
      $region14: #{traj_pre_simple.5} parent=11 // pred_check_branch
        %98 = sbr.rel (%p96) target = $region16
      $region15: #{traj_pre_simple.5} parent=11 // pred_region
        _
      $region16: #{traj_pre_simple.5} parent=11 // pred_fallthru
        _
    $region12: #{traj_pre_simple.5} parent=5 // pred_fallthru
      _
    %p99 = scmp.lt.s32.totalorder %s8, 4
    // Predicated region
    $region17: #{traj_pre_simple.5} parent=5 // pred_check
      %p100 = pneg %p99
    $region18: #{traj_pre_simple.5} parent=5 // pred_check_branch
      %102 = sbr.rel (%p100) target = $region20
    $region19: #{traj_pre_simple.5} parent=5 // pred_region
      // Predicated region
      $region21: #{traj_pre_simple.5} parent=19 // pred_check
        %p103 = pneg %p28
      $region22: #{traj_pre_simple.5} parent=19 // pred_check_branch
        %105 = sbr.rel (%p103) target = $region24
      $region23: #{traj_pre_simple.5} parent=19 // pred_region
        %p106 = scmp.lt.s32.totalorder %s8, 3
        %s107 = scalar_select %p106, %s8, 3
        %s108 = smul.addr %s107, 8
        %s109 = scalar_lea.vmem %s0, %s108
      $region24: #{traj_pre_simple.5} parent=19 // pred_fallthru
        _
    $region20: #{traj_pre_simple.5} parent=5 // pred_fallthru
      _
    %p110 = scmp.le.s32.totalorder 1, %s8
    %p111 = scmp.lt.s32.totalorder %s8, 5
    %p112 = pnand %p110, %p111
    %p113 = pneg %p112
    // Predicated region
    $region25: #{traj_pre_simple.5} parent=5 // pred_check
      _
    $region26: #{traj_pre_simple.5} parent=5 // pred_check_branch
      %115 = sbr.rel (%p112) target = $region28
    $region27: #{traj_pre_simple.5} parent=5 // pred_region
      %s116 = ssub.s32 %s8, 1
      %p117 = scmp.lt.s32.totalorder %s13, 3
      %s118 = scalar_select %p117, %s13, 3
      %s119 = smul.addr %s118, 8
      %s120 = scalar_lea.vmem %s0, %s119
      %p121 = pneg %p34
      %p122 = pneg %p31
      %p123 = pneg %p55
      %p124 = pneg %p52
      %p125 = pneg %p81
      %p126 = pneg %p78
      %p127 = scmp.lt.s32.totalorder %s13, 3
      %s128 = scalar_select %p127, %s13, 3
      %s129 = smul.addr %s128, 8
      %s130 = scalar_lea.vmem %s2, %s129
      %p131 = scmp.lt.s32.totalorder %s13, 3
      %s132 = scalar_select %p131, %s13, 3
      %s133 = smul.addr %s132, 8
      %s134 = scalar_lea.vmem %s0, %s133
      %p135 = scmp.lt.s32.totalorder %s13, 3
      %s136 = scalar_select %p135, %s13, 3
      %s137 = smul.addr %s136, 8
      %s138 = scalar_lea.vmem %s2, %s137
      %v139 = vld [vmem:[%s134] sm:$0xff]
      %v140 = vld [vmem:[%s1] sm:$0xff]
      %142 = vset.pattern.permute.xlu0 0
      %143 = vperm.xlu0 %142, %v140
      %v144 = vpop.permute.xlu0 %143
      %v146 = vsub.f32 %v139, %v144
      %147 = vst [vmem:[%s138] sm:$0xff] %v146
      %p148 = scmp.lt.s32.totalorder %s13, 3
      %s149 = scalar_select %p148, %s13, 3
      %s150 = smul.addr %s149, 8
      %s151 = scalar_lea.vmem %s2, %s150
      // Predicated region
      $region29: #{traj_pre_simple.5} parent=27 // pred_check
        %p152 = pneg %p78
      $region30: #{traj_pre_simple.5} parent=27 // pred_check_branch
        %154 = sbr.rel (%p152) target = $region32
      $region31: #{traj_pre_simple.5} parent=27 // pred_region
        _
      $region32: #{traj_pre_simple.5} parent=27 // pred_fallthru
        _
    $region28: #{traj_pre_simple.5} parent=5 // pred_fallthru
      _
    %p155 = scmp.le.s32.totalorder 2, %s8
    // Predicated region
    $region33: #{traj_pre_simple.5} parent=5 // pred_check
      %p156 = pneg %p155
    $region34: #{traj_pre_simple.5} parent=5 // pred_check_branch
      %158 = sbr.rel (%p156) target = $region36
    $region35: #{traj_pre_simple.5} parent=5 // pred_region
      %s159 = ssub.s32 %s8, 2
      // Predicated region
      $region37: #{traj_pre_simple.5} parent=35 // pred_check
        %p160 = pneg %p84
      $region38: #{traj_pre_simple.5} parent=35 // pred_check_branch
        %162 = sbr.rel (%p160) target = $region40
      $region39: #{traj_pre_simple.5} parent=35 // pred_region
        %p163 = scmp.lt.s32.totalorder %s14, 3
        %s164 = scalar_select %p163, %s14, 3
        %s165 = smul.addr %s164, 8
        %s166 = scalar_lea.vmem %s2, %s165
      $region40: #{traj_pre_simple.5} parent=35 // pred_fallthru
        _
    $region36: #{traj_pre_simple.5} parent=5 // pred_fallthru
      _
  $region6: #{traj_pre_simple.5} parent=0 // loop_footer
    %s12 = sadd.s32 1, %s8
  $region7: #{traj_pre_simple.5} parent=0 // loop_footer_branch
    %7 = sbr.rel target = $region3
  $region8: #{traj_pre_simple.5} parent=0 // loop_exit
    _

// kernel: traj_pre_simple.4
$region0: #{traj_pre_simple.4}
  #allocation0 [shape = 'u32[]', space=smem, size = 0x4, offset = 0x4, fixed_abs, tag = 'smem constant byte address 0x4 - core index']
  #allocation1 [shape = 'u32[72,128]{1,0:T(1,128)}', space=vmem, size = 0x9000, scoped, tag = 'internal scratch']
  #allocation2 [shape = 'f32[8,1]{1,0:T(8,128)}', space=vmem, size = 0x1000, scoped, tag = 'scratch operand']
  #allocation3 [shape = 'f32[8,1]{1,0:T(8,128)}', space=vmem, size = 0x1000, scoped, tag = 'scratch operand']
  %s0 = inlined_call_operand.vmem [shape: bf16[8,128], index: 0, kind: input, shape index: {}]
  %s1 = inlined_call_operand.vmem [shape: bf16[128,512], index: 1, kind: input, shape index: {}]
  %s2 = inlined_call_operand.vmem [shape: f32[1,512], index: 2, kind: input, shape index: {}]
  %s3 = inlined_call_operand.vmem [shape: f32[8,512], index: 3, kind: output, shape index: {0}]
  %s4 = inlined_call_operand.vmem [shape: f32[2,8,1], index: 4, kind: output, shape index: {1}]
  %s5 = inlined_call_operand.vmem [shape: f32[2,8,1], index: 5, kind: output, shape index: {2}]
  %6 = xla_tuple %s3, %s4, %s5
  %s7 = sld [smem:[#allocation0]]
  $region110: #{traj_pre_simple.4} parent=0
    _
  %s9 = ssub.s32 1, %s7
  %s10 = scalar_select 0, %s9, %s7
  $region1: #{traj_pre_simple.4} parent=0
    #allocation4 [shape = 'u8[65536]{0}', space=vmem, size = 0x10000, scoped, tag = 'input window, operand 1']
    loop: start=0, step=1, limit=6
    $region2: #{traj_pre_simple.4} parent=1 // loop_pre_header
      _
    $region3: #{traj_pre_simple.4} parent=1 // loop_header
      %s12 = sphi 0, %s16
      %p13 = scmp.ge.s32.totalorder %s12, 6
      %s19 = sphi 0, %s31
      %s20 = sphi 0, %s27
      %s21 = sphi 0, %s19
      %s22 = sphi 0, %s20
      %s23 = sphi 0, %s21
      %s24 = sphi 0, %s22
      %s32 = sphi 0, %s32
      %s34 = sphi 0, %s32
      %s35 = sphi 0, %s34
      %s49 = sphi 0, %s35
      %s59 = sphi 0, %s61
      %s62 = sphi 0, %s59
      %s63 = sphi 0, %s62
      %s79 = sphi 0, %s63
      %s89 = sphi 0, %s91
      %s92 = sphi 0, %s89
      %s93 = sphi 0, %s92
      %s109 = sphi 0, %s93
      %s119 = sphi 0, %s121
      %s122 = sphi 0, %s119
      %s123 = sphi 0, %s122
      %s139 = sphi 0, %s123
      %s145 = sphi 0, %s147
      %s148 = sphi 0, %s145
      %s149 = sphi 0, %s148
      %s165 = sphi 0, %s149
      %s171 = sphi 0, %s173
      %s174 = sphi 0, %s171
      %s175 = sphi 0, %s174
      %s191 = sphi 0, %s175
    $region4: #{traj_pre_simple.4} parent=1 // loop_header_branch
      %15 = sbr.rel (%p13) target = $region8
    $region5: #{traj_pre_simple.4} parent=1 // loop_body
      %s17 = ssub.s32 %s12, 1
      %s18 = ssub.s32 %s12, 2
      %s25 = sadd.s32 1, %s20
      %p26 = scmp.ge.s32.totalorder %s25, 2
      %s27 = scalar_select %p26, 0, %s25
      %s28 = sadd.s32 1, %s19
      %s29 = scalar_select %p26, %s28, %s19
      %p30 = scmp.ge.s32.totalorder %s29, 2
      %s31 = scalar_select %p30, 0, %s29
      %s33 = sadd.s32 %s32, 1
      %p36 = scmp.eq.s32.totalorder %s12, 3
      %p37 = scmp.ne.s32.totalorder %s32, %s34
      %p38 = scmp.eq.s32.totalorder %s12, 0
      %p39 = por %p37, %p38
      %p40 = scmp.ne.s32.totalorder %s32, %s34
      %p41 = scmp.eq.s32.totalorder %s17, 3
      %p42 = por %p40, %p41
      %p43 = scmp.ne.s32.totalorder %s34, %s35
      %p44 = scmp.eq.s32.totalorder %s17, 0
      %p45 = por %p43, %p44
      %p46 = scmp.ne.s32.totalorder %s34, %s35
      %p47 = scmp.eq.s32.totalorder %s18, 3
      %p48 = por %p46, %p47
      %p50 = scmp.ne.s32.totalorder %s35, %s49
      %p51 = scmp.eq.s32.totalorder %s18, 0
      %p52 = por %p50, %p51
      %s53 = smul.u32 %s19, 2
      %s54 = sadd.s32 %s53, %s20
      %s55 = smul.u32 %s31, 2
      %s56 = sadd.s32 %s55, %s27
      %s57 = ssub.s32 %s54, %s56
      %p58 = scmp.eq.s32.totalorder %s57, 0
      %s60 = sadd.s32 %s59, 1
      %s61 = scalar_select %p58, %s59, %s60
      %p64 = pneg %p58
      %p65 = scmp.eq.s32.totalorder %s12, 3
      %p66 = por %p64, %p65
      %p67 = scmp.ne.s32.totalorder %s59, %s62
      %p68 = scmp.eq.s32.totalorder %s12, 0
      %p69 = por %p67, %p68
      %p70 = scmp.ne.s32.totalorder %s59, %s62
      %p71 = scmp.eq.s32.totalorder %s17, 3
      %p72 = por %p70, %p71
      %p73 = scmp.ne.s32.totalorder %s62, %s63
      %p74 = scmp.eq.s32.totalorder %s17, 0
      %p75 = por %p73, %p74
      %p76 = scmp.ne.s32.totalorder %s62, %s63
      %p77 = scmp.eq.s32.totalorder %s18, 3
      %p78 = por %p76, %p77
      %p80 = scmp.ne.s32.totalorder %s63, %s79
      %p81 = scmp.eq.s32.totalorder %s18, 0
      %p82 = por %p80, %p81
      %s83 = smul.u32 %s19, 2
      %s84 = sadd.s32 %s83, %s20
      %s85 = smul.u32 %s31, 2
      %s86 = sadd.s32 %s85, %s27
      %s87 = ssub.s32 %s84, %s86
      %p88 = scmp.eq.s32.totalorder %s87, 0
      %s90 = sadd.s32 %s89, 1
      %s91 = scalar_select %p88, %s89, %s90
      %p94 = pneg %p88
      %p95 = scmp.eq.s32.totalorder %s12, 3
      %p96 = por %p94, %p95
      %p97 = scmp.ne.s32.totalorder %s89, %s92
      %p98 = scmp.eq.s32.totalorder %s12, 0
      %p99 = por %p97, %p98
      %p100 = scmp.ne.s32.totalorder %s89, %s92
      %p101 = scmp.eq.s32.totalorder %s17, 3
      %p102 = por %p100, %p101
      %p103 = scmp.ne.s32.totalorder %s92, %s93
      %p104 = scmp.eq.s32.totalorder %s17, 0
      %p105 = por %p103, %p104
      %p106 = scmp.ne.s32.totalorder %s92, %s93
      %p107 = scmp.eq.s32.totalorder %s18, 3
      %p108 = por %p106, %p107
      %p110 = scmp.ne.s32.totalorder %s93, %s109
      %p111 = scmp.eq.s32.totalorder %s18, 0
      %p112 = por %p110, %p111
      %s113 = smul.u32 %s19, 2
      %s114 = sadd.s32 %s113, %s20
      %s115 = smul.u32 %s31, 2
      %s116 = sadd.s32 %s115, %s27
      %s117 = ssub.s32 %s114, %s116
      %p118 = scmp.eq.s32.totalorder %s117, 0
      %s120 = sadd.s32 %s119, 1
      %s121 = scalar_select %p118, %s119, %s120
      %p124 = pneg %p118
      %p125 = scmp.eq.s32.totalorder %s12, 3
      %p126 = por %p124, %p125
      %p127 = scmp.ne.s32.totalorder %s119, %s122
      %p128 = scmp.eq.s32.totalorder %s12, 0
      %p129 = por %p127, %p128
      %p130 = scmp.ne.s32.totalorder %s119, %s122
      %p131 = scmp.eq.s32.totalorder %s17, 3
      %p132 = por %p130, %p131
      %p133 = scmp.ne.s32.totalorder %s122, %s123
      %p134 = scmp.eq.s32.totalorder %s17, 0
      %p135 = por %p133, %p134
      %p136 = scmp.ne.s32.totalorder %s122, %s123
      %p137 = scmp.eq.s32.totalorder %s18, 3
      %p138 = por %p136, %p137
      %p140 = scmp.ne.s32.totalorder %s123, %s139
      %p141 = scmp.eq.s32.totalorder %s18, 0
      %p142 = por %p140, %p141
      %s143 = ssub.s32 %s19, %s31
      %p144 = scmp.eq.s32.totalorder %s143, 0
      %s146 = sadd.s32 %s145, 1
      %s147 = scalar_select %p144, %s145, %s146
      %p150 = pneg %p144
      %p151 = scmp.eq.s32.totalorder %s12, 3
      %p152 = por %p150, %p151
      %p153 = scmp.ne.s32.totalorder %s145, %s148
      %p154 = scmp.eq.s32.totalorder %s12, 0
      %p155 = por %p153, %p154
      %p156 = scmp.ne.s32.totalorder %s145, %s148
      %p157 = scmp.eq.s32.totalorder %s17, 3
      %p158 = por %p156, %p157
      %p159 = scmp.ne.s32.totalorder %s148, %s149
      %p160 = scmp.eq.s32.totalorder %s17, 0
      %p161 = por %p159, %p160
      %p162 = scmp.ne.s32.totalorder %s148, %s149
      %p163 = scmp.eq.s32.totalorder %s18, 3
      %p164 = por %p162, %p163
      %p166 = scmp.ne.s32.totalorder %s149, %s165
      %p167 = scmp.eq.s32.totalorder %s18, 0
      %p168 = por %p166, %p167
      %s169 = ssub.s32 %s19, %s31
      %p170 = scmp.eq.s32.totalorder %s169, 0
      %s172 = sadd.s32 %s171, 1
      %s173 = scalar_select %p170, %s171, %s172
      %p176 = pneg %p170
      %p177 = scmp.eq.s32.totalorder %s12, 3
      %p178 = por %p176, %p177
      %p179 = scmp.ne.s32.totalorder %s171, %s174
      %p180 = scmp.eq.s32.totalorder %s12, 0
      %p181 = por %p179, %p180
      %p182 = scmp.ne.s32.totalorder %s171, %s174
      %p183 = scmp.eq.s32.totalorder %s17, 3
      %p184 = por %p182, %p183
      %p185 = scmp.ne.s32.totalorder %s174, %s175
      %p186 = scmp.eq.s32.totalorder %s17, 0
      %p187 = por %p185, %p186
      %p188 = scmp.ne.s32.totalorder %s174, %s175
      %p189 = scmp.eq.s32.totalorder %s18, 3
      %p190 = por %p188, %p189
      %p192 = scmp.ne.s32.totalorder %s175, %s191
      %p193 = scmp.eq.s32.totalorder %s18, 0
      %p194 = por %p192, %p193
      %p195 = scmp.le.s32.totalorder 1, %s12
      %p196 = scmp.lt.s32.totalorder %s12, 5
      %p197 = pnand %p195, %p196
      %p198 = pneg %p197
      // Predicated region
      $region9: #{traj_pre_simple.4} parent=5 // pred_check
        _
      $region10: #{traj_pre_simple.4} parent=5 // pred_check_branch
        %200 = sbr.rel (%p197) target = $region12
      $region11: #{traj_pre_simple.4} parent=5 // pred_region
        %s201 = ssub.s32 %s12, 1
        // Predicated region
        $region13: #{traj_pre_simple.4} parent=11 // pred_check
          %p202 = pneg %p45
        $region14: #{traj_pre_simple.4} parent=11 // pred_check_branch
          %204 = sbr.rel (%p202) target = $region16
        $region15: #{traj_pre_simple.4} parent=11 // pred_region
          _
        $region16: #{traj_pre_simple.4} parent=11 // pred_fallthru
          _
      $region12: #{traj_pre_simple.4} parent=5 // pred_fallthru
        _
      %p205 = scmp.lt.s32.totalorder %s12, 4
      // Predicated region
      $region17: #{traj_pre_simple.4} parent=5 // pred_check
        %p206 = pneg %p205
      $region18: #{traj_pre_simple.4} parent=5 // pred_check_branch
        %208 = sbr.rel (%p206) target = $region20
      $region19: #{traj_pre_simple.4} parent=5 // pred_region
        // Predicated region
        $region21: #{traj_pre_simple.4} parent=19 // pred_check
          %p209 = pneg %p69
        $region22: #{traj_pre_simple.4} parent=19 // pred_check_branch
          %211 = sbr.rel (%p209) target = $region24
        $region23: #{traj_pre_simple.4} parent=19 // pred_region
          %s212 = sand.u32 %s59, 1
          %s213 = sand.u32 %s59, 1
          %s214 = smul.addr %s213, 64
          %s215 = scalar_lea.vmem [#allocation4], %s214
          %s216 = smul.u32 %s19, 2
          %s217 = sadd.s32 %s216, %s20
          %s218 = smul.addr %s217, 4
          %s219 = scalar_lea.vmem %s1, %s218
          // Predicated region
          $region25: #{traj_pre_simple.4} parent=23 // pred_check
            _
          $region26: #{traj_pre_simple.4} parent=23 // pred_check_branch
            %221 = sbr.rel (0) target = $region28
          $region27: #{traj_pre_simple.4} parent=23 // pred_region
            // Predicated region
            $region29: #{traj_pre_simple.4} parent=27 // pred_check
              _
            $region30: #{traj_pre_simple.4} parent=27 // pred_check_branch
              %223 = sbr.rel target = $region32
            $region31: #{traj_pre_simple.4} parent=27 // pred_region
              // Predicated region
              $region44: #{traj_pre_simple.4} parent=31 // pred_check
                _
              $region45: #{traj_pre_simple.4} parent=31 // pred_check_branch
                %269 = sbr.rel (0) target = $region47
              $region46: #{traj_pre_simple.4} parent=31 // pred_region
                loop: start=0, step=1, limit=1
                $region48: #{traj_pre_simple.4} parent=46 // loop_pre_header
                  _
                $region49: #{traj_pre_simple.4} parent=46 // loop_header
                  %s271 = sphi 0, %s275
                  %p272 = scmp.ge.s32.totalorder %s271, 1
                  %s276 = sphi %s219, %s219
                  %s277 = sphi %s215, %s215
                $region50: #{traj_pre_simple.4} parent=46 // loop_header_branch
                  %274 = sbr.rel (%p272) target = $region54
                $region51: #{traj_pre_simple.4} parent=46 // loop_body
                  _
                $region52: #{traj_pre_simple.4} parent=46 // loop_footer
                  %s275 = sadd.s32 1, %s271
                $region53: #{traj_pre_simple.4} parent=46 // loop_footer_branch
                  %270 = sbr.rel target = $region49
                $region54: #{traj_pre_simple.4} parent=46 // loop_exit
                  _
                %s279 = ssub.s32 16, 1
                loop: start=0, step=1, limit=1
                $region55: #{traj_pre_simple.4} parent=46 // loop_pre_header
                  _
                $region56: #{traj_pre_simple.4} parent=46 // loop_header
                  %s281 = sphi 0, %s285
                  %p282 = scmp.ge.s32.totalorder %s281, 1
                  %s286 = sphi %s219, %s219
                  %s287 = sphi %s215, %s215
                $region57: #{traj_pre_simple.4} parent=46 // loop_header_branch
                  %284 = sbr.rel (%p282) target = $region61
                $region58: #{traj_pre_simple.4} parent=46 // loop_body
                  %v288 = vld [vmem:[%s286] sm:%s279]
                  %289 = vst [vmem:[%s287] sm:%s279] %v288
                  %v290 = vld [vmem:[%s286 + $0x10] sm:%s279]
                  %291 = vst [vmem:[%s287 + $0x4] sm:%s279] %v290
                  %v292 = vld [vmem:[%s286 + $0x20] sm:%s279]
                  %293 = vst [vmem:[%s287 + $0x8] sm:%s279] %v292
                  %v294 = vld [vmem:[%s286 + $0x30] sm:%s279]
                  %295 = vst [vmem:[%s287 + $0xc] sm:%s279] %v294
                  %v296 = vld [vmem:[%s286 + $0x40] sm:%s279]
                  %297 = vst [vmem:[%s287 + $0x10] sm:%s279] %v296
                  %v298 = vld [vmem:[%s286 + $0x50] sm:%s279]
                  %299 = vst [vmem:[%s287 + $0x14] sm:%s279] %v298
                  %v300 = vld [vmem:[%s286 + $0x60] sm:%s279]
                  %301 = vst [vmem:[%s287 + $0x18] sm:%s279] %v300
                  %v302 = vld [vmem:[%s286 + $0x70] sm:%s279]
                  %303 = vst [vmem:[%s287 + $0x1c] sm:%s279] %v302
                  %v304 = vld [vmem:[%s286 + $0x80] sm:%s279]
                  %305 = vst [vmem:[%s287 + $0x20] sm:%s279] %v304
                  %v306 = vld [vmem:[%s286 + $0x90] sm:%s279]
                  %307 = vst [vmem:[%s287 + $0x24] sm:%s279] %v306
                  %v308 = vld [vmem:[%s286 + $0xa0] sm:%s279]
                  %309 = vst [vmem:[%s287 + $0x28] sm:%s279] %v308
                  %v310 = vld [vmem:[%s286 + $0xb0] sm:%s279]
                  %311 = vst [vmem:[%s287 + $0x2c] sm:%s279] %v310
                  %v312 = vld [vmem:[%s286 + $0xc0] sm:%s279]
                  %313 = vst [vmem:[%s287 + $0x30] sm:%s279] %v312
                  %v314 = vld [vmem:[%s286 + $0xd0] sm:%s279]
                  %315 = vst [vmem:[%s287 + $0x34] sm:%s279] %v314
                  %v316 = vld [vmem:[%s286 + $0xe0] sm:%s279]
                  %317 = vst [vmem:[%s287 + $0x38] sm:%s279] %v316
                  %v318 = vld [vmem:[%s286 + $0xf0] sm:%s279]
                  %319 = vst [vmem:[%s287 + $0x3c] sm:%s279] %v318
                $region59: #{traj_pre_simple.4} parent=46 // loop_footer
                  %s285 = sadd.s32 1, %s281
                $region60: #{traj_pre_simple.4} parent=46 // loop_footer_branch
                  %280 = sbr.rel target = $region56
                $region61: #{traj_pre_simple.4} parent=46 // loop_exit
                  _
              $region47: #{traj_pre_simple.4} parent=31 // pred_fallthru
                _
            $region32: #{traj_pre_simple.4} parent=27 // pred_fallthru
              _
            // Predicated region
            $region33: #{traj_pre_simple.4} parent=27 // pred_check
              _
            $region34: #{traj_pre_simple.4} parent=27 // pred_check_branch
              %225 = sbr.rel (0) target = $region36
            $region35: #{traj_pre_simple.4} parent=27 // pred_region
              %s227 = ssub.s32 16, 1
              loop: start=0, step=1, limit=1
              $region37: #{traj_pre_simple.4} parent=35 // loop_pre_header
                _
              $region38: #{traj_pre_simple.4} parent=35 // loop_header
                %s229 = sphi 0, %s233
                %p230 = scmp.ge.s32.totalorder %s229, 1
                %s234 = sphi %s219, %s219
                %s235 = sphi %s215, %s215
              $region39: #{traj_pre_simple.4} parent=35 // loop_header_branch
                %232 = sbr.rel (%p230) target = $region43
              $region40: #{traj_pre_simple.4} parent=35 // loop_body
                %v236 = vld [vmem:[%s234] sm:%s227]
                %237 = vst [vmem:[%s235] sm:%s227] %v236
                %v238 = vld [vmem:[%s234 + $0x10] sm:%s227]
                %239 = vst [vmem:[%s235 + $0x4] sm:%s227] %v238
                %v240 = vld [vmem:[%s234 + $0x20] sm:%s227]
                %241 = vst [vmem:[%s235 + $0x8] sm:%s227] %v240
                %v242 = vld [vmem:[%s234 + $0x30] sm:%s227]
                %243 = vst [vmem:[%s235 + $0xc] sm:%s227] %v242
                %v244 = vld [vmem:[%s234 + $0x40] sm:%s227]
                %245 = vst [vmem:[%s235 + $0x10] sm:%s227] %v244
                %v246 = vld [vmem:[%s234 + $0x50] sm:%s227]
                %247 = vst [vmem:[%s235 + $0x14] sm:%s227] %v246
                %v248 = vld [vmem:[%s234 + $0x60] sm:%s227]
                %249 = vst [vmem:[%s235 + $0x18] sm:%s227] %v248
                %v250 = vld [vmem:[%s234 + $0x70] sm:%s227]
                %251 = vst [vmem:[%s235 + $0x1c] sm:%s227] %v250
                %v252 = vld [vmem:[%s234 + $0x80] sm:%s227]
                %253 = vst [vmem:[%s235 + $0x20] sm:%s227] %v252
                %v254 = vld [vmem:[%s234 + $0x90] sm:%s227]
                %255 = vst [vmem:[%s235 + $0x24] sm:%s227] %v254
                %v256 = vld [vmem:[%s234 + $0xa0] sm:%s227]
                %257 = vst [vmem:[%s235 + $0x28] sm:%s227] %v256
                %v258 = vld [vmem:[%s234 + $0xb0] sm:%s227]
                %259 = vst [vmem:[%s235 + $0x2c] sm:%s227] %v258
                %v260 = vld [vmem:[%s234 + $0xc0] sm:%s227]
                %261 = vst [vmem:[%s235 + $0x30] sm:%s227] %v260
                %v262 = vld [vmem:[%s234 + $0xd0] sm:%s227]
                %263 = vst [vmem:[%s235 + $0x34] sm:%s227] %v262
                %v264 = vld [vmem:[%s234 + $0xe0] sm:%s227]
                %265 = vst [vmem:[%s235 + $0x38] sm:%s227] %v264
                %v266 = vld [vmem:[%s234 + $0xf0] sm:%s227]
                %267 = vst [vmem:[%s235 + $0x3c] sm:%s227] %v266
              $region41: #{traj_pre_simple.4} parent=35 // loop_footer
                %s233 = sadd.s32 1, %s229
              $region42: #{traj_pre_simple.4} parent=35 // loop_footer_branch
                %228 = sbr.rel target = $region38
              $region43: #{traj_pre_simple.4} parent=35 // loop_exit
                _
            $region36: #{traj_pre_simple.4} parent=27 // pred_fallthru
              _
          $region28: #{traj_pre_simple.4} parent=23 // pred_fallthru
            _
          %320 = vnop
        $region24: #{traj_pre_simple.4} parent=19 // pred_fallthru
          _
        // Predicated region
        $region62: #{traj_pre_simple.4} parent=19 // pred_check
          %p321 = pneg %p99
        $region63: #{traj_pre_simple.4} parent=19 // pred_check_branch
          %323 = sbr.rel (%p321) target = $region65
        $region64: #{traj_pre_simple.4} parent=19 // pred_region
          %s324 = smul.u32 %s19, 2
          %s325 = sadd.s32 %s324, %s20
          %p326 = scmp.lt.s32.totalorder %s325, 3
          %s327 = scalar_select %p326, %s325, 3
          %s328 = scalar_lea.vmem %s2, %s327
          %s329 = smul.u32 %s19, 2
          %s330 = sadd.s32 %s329, %s20
        $region65: #{traj_pre_simple.4} parent=19 // pred_fallthru
          _
      $region20: #{traj_pre_simple.4} parent=5 // pred_fallthru
        _
      %p331 = scmp.le.s32.totalorder 1, %s12
      %p332 = scmp.lt.s32.totalorder %s12, 5
      %p333 = pnand %p331, %p332
      %p334 = pneg %p333
      // Predicated region
      $region66: #{traj_pre_simple.4} parent=5 // pred_check
        _
      $region67: #{traj_pre_simple.4} parent=5 // pred_check_branch
        %336 = sbr.rel (%p333) target = $region69
      $region68: #{traj_pre_simple.4} parent=5 // pred_region
        %s337 = ssub.s32 %s12, 1
        %s338 = sand.u32 %s62, 1
        %s339 = sand.u32 %s62, 1
        %s340 = smul.addr %s339, 64
        %s341 = scalar_lea.vmem [#allocation4], %s340
        // Predicated region
        $region70: #{traj_pre_simple.4} parent=68 // pred_check
          %p342 = pneg %p75
        $region71: #{traj_pre_simple.4} parent=68 // pred_check_branch
          %344 = sbr.rel (%p342) target = $region73
        $region72: #{traj_pre_simple.4} parent=68 // pred_region
          _
        $region73: #{traj_pre_simple.4} parent=68 // pred_fallthru
          _
        %p345 = pneg %p45
        %p346 = pneg %p42
        %s347 = sand.u32 %s62, 1
        %s348 = sand.u32 %s62, 1
        %s349 = smul.addr %s348, 64
        %s350 = scalar_lea.vmem [#allocation4], %s349
        %p351 = pneg %p75
        %p352 = pneg %p72
        %s353 = smul.u32 %s21, 2
        %s354 = sadd.s32 %s353, %s22
        %p355 = scmp.lt.s32.totalorder %s354, 3
        %s356 = scalar_select %p355, %s354, 3
        %s357 = scalar_lea.vmem %s2, %s356
        %p358 = pneg %p105
        %p359 = pneg %p102
        %p360 = pneg %p135
        %p361 = pneg %p132
        %s362 = smul.u32 %s21, 2
        %s363 = sadd.s32 %s362, %s22
        %p364 = scmp.lt.s32.totalorder %s363, 3
        %s365 = scalar_select %p364, %s363, 3
        %s366 = smul.addr %s365, 8
        %s367 = scalar_lea.vmem %s3, %s366
        %p368 = pneg %p161
        %p369 = pneg %p158
        %p370 = scmp.lt.s32.totalorder %s21, 1
        %s371 = scalar_select %p370, %s21, 1
        %s372 = smul.addr %s371, 8
        %s373 = scalar_lea.vmem %s4, %s372
        %p374 = pneg %p187
        %p375 = pneg %p184
        %p376 = scmp.lt.s32.totalorder %s21, 1
        %s377 = scalar_select %p376, %s21, 1
        %s378 = smul.addr %s377, 8
        %s379 = scalar_lea.vmem %s5, %s378
        %s380 = smul.u32 %s21, 2
        %s381 = sadd.s32 %s380, %s22
        %s382 = smul.u32 %s21, 2
        %s383 = sadd.s32 %s382, %s22
        %p384 = scmp.lt.s32.totalorder %s383, 3
        %s385 = scalar_select %p384, %s383, 3
        %s386 = scalar_lea.vmem %s2, %s385
        %s387 = smul.u32 %s21, 2
        %s388 = sadd.s32 %s387, %s22
        %s389 = smul.u32 %s21, 2
        %s390 = sadd.s32 %s389, %s22
        %p391 = scmp.lt.s32.totalorder %s390, 3
        %s392 = scalar_select %p391, %s390, 3
        %s393 = smul.addr %s392, 8
        %s394 = scalar_lea.vmem %s3, %s393
        %s395 = smul.u32 %s21, 2
        %s396 = sadd.s32 %s395, %s22
        %p397 = scmp.lt.s32.totalorder %s21, 1
        %s398 = scalar_select %p397, %s21, 1
        %s399 = smul.addr %s398, 8
        %s400 = scalar_lea.vmem %s4, %s399
        %p401 = scmp.lt.s32.totalorder %s21, 1
        %s402 = scalar_select %p401, %s21, 1
        %s403 = smul.addr %s402, 8
        %s404 = scalar_lea.vmem %s5, %s403
        %p405 = scmp.eq.s32.totalorder %s22, 0
        // Predicated region
        $region74: #{traj_pre_simple.4} parent=68 // pred_check
          %p406 = pneg %p405
        $region75: #{traj_pre_simple.4} parent=68 // pred_check_branch
          %408 = sbr.rel (%p406) target = $region77
        $region76: #{traj_pre_simple.4} parent=68 // pred_region
          %vm409 = vcmask 7168
          %410 = vst.msk [vmem:[#allocation2] sm:$0xff] %vm409, -inf
          %411 = vst.msk [vmem:[#allocation3] sm:$0xff] %vm409, 0.0
        $region77: #{traj_pre_simple.4} parent=68 // pred_fallthru
          _
        %v412 = vld [vmem:[%s0] sm:$0xf]
        %v413 = vld [vmem:[%s341] sm:$0xf]
        %v414 = vld [vmem:[%s341 + $0x4] sm:$0xf]
        %v415 = vld [vmem:[%s341 + $0x8] sm:$0xf]
        %v416 = vld [vmem:[%s341 + $0xc] sm:$0xf]
        %v417 = vld [vmem:[%s341 + $0x10] sm:$0xf]
        %v418 = vld [vmem:[%s341 + $0x14] sm:$0xf]
        %v419 = vld [vmem:[%s341 + $0x18] sm:$0xf]
        %v420 = vld [vmem:[%s341 + $0x1c] sm:$0xf]
        %v421 = vld [vmem:[%s341 + $0x20] sm:$0xf]
        %v422 = vld [vmem:[%s341 + $0x24] sm:$0xf]
        %v423 = vld [vmem:[%s341 + $0x28] sm:$0xf]
        %v424 = vld [vmem:[%s341 + $0x2c] sm:$0xf]
        %v425 = vld [vmem:[%s341 + $0x30] sm:$0xf]
        %v426 = vld [vmem:[%s341 + $0x34] sm:$0xf]
        %v427 = vld [vmem:[%s341 + $0x38] sm:$0xf]
        %v428 = vld [vmem:[%s341 + $0x3c] sm:$0xf]
        %v429 = vld [vmem:[%s386] sm:$0x1]
        %v431 = vperm.slane %v429, 0
        %v449 = vunpack.c.l.b16 %v413
        %v450 = vunpack.c.l.b16 %v414
        %v451 = vunpack.c.l.b16 %v415
        %v452 = vunpack.c.l.b16 %v416
        %v453 = vunpack.c.l.b16 %v417
        %v454 = vunpack.c.l.b16 %v418
        %v455 = vunpack.c.l.b16 %v419
        %v456 = vunpack.c.l.b16 %v420
        %v457 = vunpack.c.l.b16 %v421
        %v458 = vunpack.c.l.b16 %v422
        %v459 = vunpack.c.l.b16 %v423
        %v460 = vunpack.c.l.b16 %v424
        %v461 = vunpack.c.l.b16 %v425
        %v462 = vunpack.c.l.b16 %v426
        %v463 = vunpack.c.l.b16 %v427
        %v464 = vunpack.c.l.b16 %v428
        %v465 = vpack.c.b16 %v450, %v449
        %v466 = vpack.c.b16 %v452, %v451
        %v467 = vpack.c.b16 %v454, %v453
        %v468 = vpack.c.b16 %v456, %v455
        %v469 = vpack.c.b16 %v458, %v457
        %v470 = vpack.c.b16 %v460, %v459
        %v471 = vpack.c.b16 %v462, %v461
        %v472 = vpack.c.b16 %v464, %v463
        %481 = vmatpush.bf16.msra.mxu0 %v472
        %482 = vmatpush.bf16.msra.mxu0 %v471
        %483 = vmatpush.bf16.msra.mxu0 %v470
        %484 = vmatpush.bf16.msra.mxu0 %v469
        %485 = vmatpush.bf16.msra.mxu0 %v468
        %486 = vmatpush.bf16.msra.mxu0 %v467
        %487 = vmatpush.bf16.msra.mxu0 %v466
        %488 = vmatpush.bf16.msra.mxu0 %v465
        %489 = vmatmul.bf16.gmra.mxu0 %v412
        %v490 = vpop.f32.mrf.mxu0
        %v491 = vadd.f32 %v431, %v490
        %v492 = vpop.f32.mrf.mxu0
        %493 = vdwg.mxu0
        %494 = vst [vmem:[%s394] sm:$0xff] %v491
        %v495 = vld [vmem:[#allocation2] sm:$0xff]
        %496 = vmax.xlane.f32.xlu0 %v491
        %v497 = vpop.xlane.xlu0 %496
        %v498 = vmax.f32 %v495, %v497
        %v499 = vld [vmem:[#allocation3] sm:$0xff]
        %v500 = vsub.f32 %v495, %v498
        %v501 = vmul.f32 %v500, 1.442695
        %v502 = vpow.pop %v501
        %v503 = vmul.f32 %v499, %v502
        %505 = vset.pattern.permute.xlu0 0
        %506 = vperm.xlu0 %505, %v498
        %v507 = vpop.permute.xlu0 %506
        %v509 = vsub.f32 %v491, %v507
        %v510 = vmul.f32 %v509, 1.442695
        %v511 = vpow.pop %v510
        %512 = vadd.xlane.f32.xlu0 %v511
        %v513 = vpop.xlane.xlu0 %512
        %v514 = vadd.f32 %v503, %v513
        %vm515 = vcmask 7168
        %516 = vst.msk [vmem:[#allocation3] sm:$0xff] %vm515, %v514
        %517 = vst.msk [vmem:[#allocation2] sm:$0xff] %vm515, %v498
        %p518 = scmp.eq.s32.totalorder %s22, 1
        // Predicated region
        $region78: #{traj_pre_simple.4} parent=68 // pred_check
          %p519 = pneg %p518
        $region79: #{traj_pre_simple.4} parent=68 // pred_check_branch
          %521 = sbr.rel (%p519) target = $region81
        $region80: #{traj_pre_simple.4} parent=68 // pred_region
          %v522 = vld [vmem:[#allocation2] sm:$0xff]
          %523 = vst.msk [vmem:[%s400] sm:$0xff] %vm515, %v522
          %v524 = vld [vmem:[#allocation3] sm:$0xff]
          %525 = vst.msk [vmem:[%s404] sm:$0xff] %vm515, %v524
        $region81: #{traj_pre_simple.4} parent=68 // pred_fallthru
          _
        %s526 = smul.u32 %s21, 2
        %s527 = sadd.s32 %s526, %s22
        %p528 = scmp.lt.s32.totalorder %s527, 3
        %s529 = scalar_select %p528, %s527, 3
        %s530 = smul.addr %s529, 8
        %s531 = scalar_lea.vmem %s3, %s530
        %p532 = scmp.lt.s32.totalorder %s21, 1
        %s533 = scalar_select %p532, %s21, 1
        %s534 = smul.addr %s533, 8
        %s535 = scalar_lea.vmem %s4, %s534
        %p536 = scmp.lt.s32.totalorder %s21, 1
        %s537 = scalar_select %p536, %s21, 1
        %s538 = smul.addr %s537, 8
        %s539 = scalar_lea.vmem %s5, %s538
        // Predicated region
        $region82: #{traj_pre_simple.4} parent=68 // pred_check
          %p540 = pneg %p132
        $region83: #{traj_pre_simple.4} parent=68 // pred_check_branch
          %542 = sbr.rel (%p540) target = $region85
        $region84: #{traj_pre_simple.4} parent=68 // pred_region
          %s543 = smul.u32 %s21, 2
          %s544 = sadd.s32 %s543, %s22
        $region85: #{traj_pre_simple.4} parent=68 // pred_fallthru
          _
        // Predicated region
        $region86: #{traj_pre_simple.4} parent=68 // pred_check
          %p545 = pneg %p158
        $region87: #{traj_pre_simple.4} parent=68 // pred_check_branch
          %547 = sbr.rel (%p545) target = $region89
        $region88: #{traj_pre_simple.4} parent=68 // pred_region
          _
        $region89: #{traj_pre_simple.4} parent=68 // pred_fallthru
          _
        // Predicated region
        $region90: #{traj_pre_simple.4} parent=68 // pred_check
          %p548 = pneg %p184
        $region91: #{traj_pre_simple.4} parent=68 // pred_check_branch
          %550 = sbr.rel (%p548) target = $region93
        $region92: #{traj_pre_simple.4} parent=68 // pred_region
          _
        $region93: #{traj_pre_simple.4} parent=68 // pred_fallthru
          _
      $region69: #{traj_pre_simple.4} parent=5 // pred_fallthru
        _
      %p551 = scmp.le.s32.totalorder 2, %s12
      // Predicated region
      $region94: #{traj_pre_simple.4} parent=5 // pred_check
        %p552 = pneg %p551
      $region95: #{traj_pre_simple.4} parent=5 // pred_check_branch
        %554 = sbr.rel (%p552) target = $region97
      $region96: #{traj_pre_simple.4} parent=5 // pred_region
        %s555 = ssub.s32 %s12, 2
        // Predicated region
        $region98: #{traj_pre_simple.4} parent=96 // pred_check
          %p556 = pneg %p138
        $region99: #{traj_pre_simple.4} parent=96 // pred_check_branch
          %558 = sbr.rel (%p556) target = $region101
        $region100: #{traj_pre_simple.4} parent=96 // pred_region
          %s559 = smul.u32 %s23, 2
          %s560 = sadd.s32 %s559, %s24
          %p561 = scmp.lt.s32.totalorder %s560, 3
          %s562 = scalar_select %p561, %s560, 3
          %s563 = smul.addr %s562, 8
          %s564 = scalar_lea.vmem %s3, %s563
        $region101: #{traj_pre_simple.4} parent=96 // pred_fallthru
          _
        // Predicated region
        $region102: #{traj_pre_simple.4} parent=96 // pred_check
          %p565 = pneg %p164
        $region103: #{traj_pre_simple.4} parent=96 // pred_check_branch
          %567 = sbr.rel (%p565) target = $region105
        $region104: #{traj_pre_simple.4} parent=96 // pred_region
          %p568 = scmp.lt.s32.totalorder %s23, 1
          %s569 = scalar_select %p568, %s23, 1
          %s570 = smul.addr %s569, 8
          %s571 = scalar_lea.vmem %s4, %s570
        $region105: #{traj_pre_simple.4} parent=96 // pred_fallthru
          _
        // Predicated region
        $region106: #{traj_pre_simple.4} parent=96 // pred_check
          %p572 = pneg %p190
        $region107: #{traj_pre_simple.4} parent=96 // pred_check_branch
          %574 = sbr.rel (%p572) target = $region109
        $region108: #{traj_pre_simple.4} parent=96 // pred_region
          %p575 = scmp.lt.s32.totalorder %s23, 1
          %s576 = scalar_select %p575, %s23, 1
          %s577 = smul.addr %s576, 8
          %s578 = scalar_lea.vmem %s5, %s577
        $region109: #{traj_pre_simple.4} parent=96 // pred_fallthru
          _
      $region97: #{traj_pre_simple.4} parent=5 // pred_fallthru
        _
    $region6: #{traj_pre_simple.4} parent=1 // loop_footer
      %s16 = sadd.s32 1, %s12
    $region7: #{traj_pre_simple.4} parent=1 // loop_footer_branch
      %11 = sbr.rel target = $region3
    $region8: #{traj_pre_simple.4} parent=1 // loop_exit
      _

// kernel: traj_pre_simple.3
$region0: #{traj_pre_simple.3}
  #allocation0 [shape = 'u32[]', space=smem, size = 0x4, offset = 0x4, fixed_abs, tag = 'smem constant byte address 0x4 - core index']
  #allocation1 [shape = 'u32[72,128]{1,0:T(1,128)}', space=vmem, size = 0x9000, scoped, tag = 'internal scratch']
  #allocation2 [shape = 'f32[8,384]{1,0:T(8,128)}', space=vmem, size = 0x3000, scoped, tag = 'scratch operand']
  #allocation3 [shape = 'f32[8,128]{1,0:T(8,128)}', space=vmem, size = 0x1000, scoped, tag = 'scratch operand']
  %s0 = inlined_call_operand.vmem [shape: bf16[8,128], index: 0, kind: input, shape index: {}]
  %s1 = inlined_call_operand.vmem [shape: bf16[128,384], index: 1, kind: input, shape index: {}]
  %s2 = inlined_call_operand.vmem [shape: bf16[128,384], index: 2, kind: input, shape index: {}]
  %s3 = inlined_call_operand.vmem [shape: f32[1,384], index: 3, kind: input, shape index: {}]
  %s4 = inlined_call_operand.vmem [shape: f32[1,384], index: 4, kind: input, shape index: {}]
  %s5 = inlined_call_operand.vmem [shape: bf16[8,128], index: 5, kind: output, shape index: {}]
  %s6 = sld [smem:[#allocation0]]
  $region30: #{traj_pre_simple.3} parent=0
    _
  %s8 = ssub.s32 1, %s6
  %s9 = scalar_select 0, %s8, %s6
  // Predicated region
  $region2: #{traj_pre_simple.3} parent=0 // pred_check
    _
  $region3: #{traj_pre_simple.3} parent=0 // pred_check_branch
    %11 = sbr.rel (0) target = $region5
  $region4: #{traj_pre_simple.3} parent=0 // pred_region
    _
  $region5: #{traj_pre_simple.3} parent=0 // pred_fallthru
    _
  // Predicated region
  $region6: #{traj_pre_simple.3} parent=0 // pred_check
    _
  $region7: #{traj_pre_simple.3} parent=0 // pred_check_branch
    %13 = sbr.rel (0) target = $region9
  $region8: #{traj_pre_simple.3} parent=0 // pred_region
    _
  $region9: #{traj_pre_simple.3} parent=0 // pred_fallthru
    _
  // Predicated region
  $region10: #{traj_pre_simple.3} parent=0 // pred_check
    _
  $region11: #{traj_pre_simple.3} parent=0 // pred_check_branch
    %15 = sbr.rel (0) target = $region13
  $region12: #{traj_pre_simple.3} parent=0 // pred_region
    _
  $region13: #{traj_pre_simple.3} parent=0 // pred_fallthru
    _
  // Predicated region
  $region14: #{traj_pre_simple.3} parent=0 // pred_check
    _
  $region15: #{traj_pre_simple.3} parent=0 // pred_check_branch
    %17 = sbr.rel (0) target = $region17
  $region16: #{traj_pre_simple.3} parent=0 // pred_region
    _
  $region17: #{traj_pre_simple.3} parent=0 // pred_fallthru
    _
  // Predicated region
  $region18: #{traj_pre_simple.3} parent=0 // pred_check
    _
  $region19: #{traj_pre_simple.3} parent=0 // pred_check_branch
    %19 = sbr.rel (0) target = $region21
  $region20: #{traj_pre_simple.3} parent=0 // pred_region
    _
  $region21: #{traj_pre_simple.3} parent=0 // pred_fallthru
    _
  %v21 = vld [vmem:[%s0] sm:$0xf]
  %v22 = vld [vmem:[%s1] sm:$0xff]
  %v23 = vld [vmem:[%s1 + $0x8] sm:$0xf]
  %v24 = vld [vmem:[%s1 + $0xc] sm:$0xff]
  %v25 = vld [vmem:[%s1 + $0x14] sm:$0xf]
  %v26 = vld [vmem:[%s1 + $0x18] sm:$0xff]
  %v27 = vld [vmem:[%s1 + $0x20] sm:$0xf]
  %v28 = vld [vmem:[%s1 + $0x24] sm:$0xff]
  %v29 = vld [vmem:[%s1 + $0x2c] sm:$0xf]
  %v30 = vld [vmem:[%s1 + $0x30] sm:$0xff]
  %v31 = vld [vmem:[%s1 + $0x38] sm:$0xf]
  %v32 = vld [vmem:[%s1 + $0x3c] sm:$0xff]
  %v33 = vld [vmem:[%s1 + $0x44] sm:$0xf]
  %v34 = vld [vmem:[%s1 + $0x48] sm:$0xff]
  %v35 = vld [vmem:[%s1 + $0x50] sm:$0xf]
  %v36 = vld [vmem:[%s1 + $0x54] sm:$0xff]
  %v37 = vld [vmem:[%s1 + $0x5c] sm:$0xf]
  %v38 = vld [vmem:[%s1 + $0x60] sm:$0xff]
  %v39 = vld [vmem:[%s1 + $0x68] sm:$0xf]
  %v40 = vld [vmem:[%s1 + $0x6c] sm:$0xff]
  %v41 = vld [vmem:[%s1 + $0x74] sm:$0xf]
  %v42 = vld [vmem:[%s1 + $0x78] sm:$0xff]
  %v43 = vld [vmem:[%s1 + $0x80] sm:$0xf]
  %v44 = vld [vmem:[%s1 + $0x84] sm:$0xff]
  %v45 = vld [vmem:[%s1 + $0x8c] sm:$0xf]
  %v46 = vld [vmem:[%s1 + $0x90] sm:$0xff]
  %v47 = vld [vmem:[%s1 + $0x98] sm:$0xf]
  %v48 = vld [vmem:[%s1 + $0x9c] sm:$0xff]
  %v49 = vld [vmem:[%s1 + $0xa4] sm:$0xf]
  %v50 = vld [vmem:[%s1 + $0xa8] sm:$0xff]
  %v51 = vld [vmem:[%s1 + $0xb0] sm:$0xf]
  %v52 = vld [vmem:[%s1 + $0xb4] sm:$0xff]
  %v53 = vld [vmem:[%s1 + $0xbc] sm:$0xf]
  %v54 = vld [vmem:[%s3] sm:$0x7]
  %v56 = vperm.slane %v54, 0
  %v57 = vperm.slane %v54, 1
  %v58 = vperm.slane %v54, 2
  %v94 = vunpack.c.l.b16 %v22
  %v95 = vunpack.c.h.b16 %v22
  %v96 = vunpack.c.l.b16 %v23
  %v97 = vunpack.c.l.b16 %v24
  %v98 = vunpack.c.h.b16 %v24
  %v99 = vunpack.c.l.b16 %v25
  %v100 = vunpack.c.l.b16 %v26
  %v101 = vunpack.c.h.b16 %v26
  %v102 = vunpack.c.l.b16 %v27
  %v103 = vunpack.c.l.b16 %v28
  %v104 = vunpack.c.h.b16 %v28
  %v105 = vunpack.c.l.b16 %v29
  %v106 = vunpack.c.l.b16 %v30
  %v107 = vunpack.c.h.b16 %v30
  %v108 = vunpack.c.l.b16 %v31
  %v109 = vunpack.c.l.b16 %v32
  %v110 = vunpack.c.h.b16 %v32
  %v111 = vunpack.c.l.b16 %v33
  %v112 = vunpack.c.l.b16 %v34
  %v113 = vunpack.c.h.b16 %v34
  %v114 = vunpack.c.l.b16 %v35
  %v115 = vunpack.c.l.b16 %v36
  %v116 = vunpack.c.h.b16 %v36
  %v117 = vunpack.c.l.b16 %v37
  %v118 = vunpack.c.l.b16 %v38
  %v119 = vunpack.c.h.b16 %v38
  %v120 = vunpack.c.l.b16 %v39
  %v121 = vunpack.c.l.b16 %v40
  %v122 = vunpack.c.h.b16 %v40
  %v123 = vunpack.c.l.b16 %v41
  %v124 = vunpack.c.l.b16 %v42
  %v125 = vunpack.c.h.b16 %v42
  %v126 = vunpack.c.l.b16 %v43
  %v127 = vunpack.c.l.b16 %v44
  %v128 = vunpack.c.h.b16 %v44
  %v129 = vunpack.c.l.b16 %v45
  %v130 = vunpack.c.l.b16 %v46
  %v131 = vunpack.c.h.b16 %v46
  %v132 = vunpack.c.l.b16 %v47
  %v133 = vunpack.c.l.b16 %v48
  %v134 = vunpack.c.h.b16 %v48
  %v135 = vunpack.c.l.b16 %v49
  %v136 = vunpack.c.l.b16 %v50
  %v137 = vunpack.c.h.b16 %v50
  %v138 = vunpack.c.l.b16 %v51
  %v139 = vunpack.c.l.b16 %v52
  %v140 = vunpack.c.h.b16 %v52
  %v141 = vunpack.c.l.b16 %v53
  %v142 = vpack.c.b16 %v97, %v94
  %v143 = vpack.c.b16 %v98, %v95
  %v144 = vpack.c.b16 %v99, %v96
  %v145 = vpack.c.b16 %v103, %v100
  %v146 = vpack.c.b16 %v104, %v101
  %v147 = vpack.c.b16 %v105, %v102
  %v148 = vpack.c.b16 %v109, %v106
  %v149 = vpack.c.b16 %v110, %v107
  %v150 = vpack.c.b16 %v111, %v108
  %v151 = vpack.c.b16 %v115, %v112
  %v152 = vpack.c.b16 %v116, %v113
  %v153 = vpack.c.b16 %v117, %v114
  %v154 = vpack.c.b16 %v121, %v118
  %v155 = vpack.c.b16 %v122, %v119
  %v156 = vpack.c.b16 %v123, %v120
  %v157 = vpack.c.b16 %v127, %v124
  %v158 = vpack.c.b16 %v128, %v125
  %v159 = vpack.c.b16 %v129, %v126
  %v160 = vpack.c.b16 %v133, %v130
  %v161 = vpack.c.b16 %v134, %v131
  %v162 = vpack.c.b16 %v135, %v132
  %v163 = vpack.c.b16 %v139, %v136
  %v164 = vpack.c.b16 %v140, %v137
  %v165 = vpack.c.b16 %v141, %v138
  %190 = vmatpush.bf16.msra.mxu0 %v163
  %191 = vmatpush.bf16.msra.mxu0 %v160
  %192 = vmatpush.bf16.msra.mxu0 %v157
  %193 = vmatpush.bf16.msra.mxu0 %v154
  %194 = vmatpush.bf16.msra.mxu0 %v151
  %195 = vmatpush.bf16.msra.mxu0 %v148
  %196 = vmatpush.bf16.msra.mxu0 %v145
  %197 = vmatpush.bf16.msra.mxu0 %v142
  %198 = vmatmul.bf16.gmra.mxu0 %v21
  %v199 = vpop.f32.mrf.mxu0
  %v200 = vadd.f32 %v56, %v199
  %v201 = vpop.f32.mrf.mxu0
  %202 = vdwg.mxu0
  %203 = vmatpush.bf16.msra.mxu0 %v164
  %204 = vmatpush.bf16.msra.mxu0 %v161
  %205 = vmatpush.bf16.msra.mxu0 %v158
  %206 = vmatpush.bf16.msra.mxu0 %v155
  %207 = vmatpush.bf16.msra.mxu0 %v152
  %208 = vmatpush.bf16.msra.mxu0 %v149
  %209 = vmatpush.bf16.msra.mxu0 %v146
  %210 = vmatpush.bf16.msra.mxu0 %v143
  %211 = vmatmul.bf16.gmra.mxu0 %v21
  %v212 = vpop.f32.mrf.mxu0
  %v213 = vadd.f32 %v57, %v212
  %v214 = vpop.f32.mrf.mxu0
  %215 = vdwg.mxu0
  %216 = vmatpush.bf16.msra.mxu0 %v165
  %217 = vmatpush.bf16.msra.mxu0 %v162
  %218 = vmatpush.bf16.msra.mxu0 %v159
  %219 = vmatpush.bf16.msra.mxu0 %v156
  %220 = vmatpush.bf16.msra.mxu0 %v153
  %221 = vmatpush.bf16.msra.mxu0 %v150
  %222 = vmatpush.bf16.msra.mxu0 %v147
  %223 = vmatpush.bf16.msra.mxu0 %v144
  %224 = vmatmul.bf16.gmra.mxu0 %v21
  %v225 = vpop.f32.mrf.mxu0
  %v226 = vadd.f32 %v58, %v225
  %v227 = vpop.f32.mrf.mxu0
  %228 = vdwg.mxu0
  %229 = vst [vmem:[#allocation2] sm:$0xff] %v200
  %230 = vst [vmem:[#allocation2 + $0x8] sm:$0xff] %v213
  %231 = vst [vmem:[#allocation2 + $0x10] sm:$0xff] %v226
  %v232 = vld [vmem:[%s2] sm:$0xff]
  %v233 = vld [vmem:[%s2 + $0x8] sm:$0xf]
  %v234 = vld [vmem:[%s2 + $0xc] sm:$0xff]
  %v235 = vld [vmem:[%s2 + $0x14] sm:$0xf]
  %v236 = vld [vmem:[%s2 + $0x18] sm:$0xff]
  %v237 = vld [vmem:[%s2 + $0x20] sm:$0xf]
  %v238 = vld [vmem:[%s2 + $0x24] sm:$0xff]
  %v239 = vld [vmem:[%s2 + $0x2c] sm:$0xf]
  %v240 = vld [vmem:[%s2 + $0x30] sm:$0xff]
  %v241 = vld [vmem:[%s2 + $0x38] sm:$0xf]
  %v242 = vld [vmem:[%s2 + $0x3c] sm:$0xff]
  %v243 = vld [vmem:[%s2 + $0x44] sm:$0xf]
  %v244 = vld [vmem:[%s2 + $0x48] sm:$0xff]
  %v245 = vld [vmem:[%s2 + $0x50] sm:$0xf]
  %v246 = vld [vmem:[%s2 + $0x54] sm:$0xff]
  %v247 = vld [vmem:[%s2 + $0x5c] sm:$0xf]
  %v248 = vld [vmem:[%s2 + $0x60] sm:$0xff]
  %v249 = vld [vmem:[%s2 + $0x68] sm:$0xf]
  %v250 = vld [vmem:[%s2 + $0x6c] sm:$0xff]
  %v251 = vld [vmem:[%s2 + $0x74] sm:$0xf]
  %v252 = vld [vmem:[%s2 + $0x78] sm:$0xff]
  %v253 = vld [vmem:[%s2 + $0x80] sm:$0xf]
  %v254 = vld [vmem:[%s2 + $0x84] sm:$0xff]
  %v255 = vld [vmem:[%s2 + $0x8c] sm:$0xf]
  %v256 = vld [vmem:[%s2 + $0x90] sm:$0xff]
  %v257 = vld [vmem:[%s2 + $0x98] sm:$0xf]
  %v258 = vld [vmem:[%s2 + $0x9c] sm:$0xff]
  %v259 = vld [vmem:[%s2 + $0xa4] sm:$0xf]
  %v260 = vld [vmem:[%s2 + $0xa8] sm:$0xff]
  %v261 = vld [vmem:[%s2 + $0xb0] sm:$0xf]
  %v262 = vld [vmem:[%s2 + $0xb4] sm:$0xff]
  %v263 = vld [vmem:[%s2 + $0xbc] sm:$0xf]
  %v264 = vld [vmem:[%s4] sm:$0x7]
  %265 = vst [vmem:[#allocation3] sm:$0xff] 0.0
  %v266 = vld [vmem:[#allocation2] ss:$8 sm:$0x7]
  %v299 = vunpack.c.l.b16 %v232
  %v300 = vunpack.c.h.b16 %v232
  %v301 = vunpack.c.l.b16 %v233
  %v302 = vunpack.c.l.b16 %v234
  %v303 = vunpack.c.h.b16 %v234
  %v304 = vunpack.c.l.b16 %v235
  %v305 = vunpack.c.l.b16 %v236
  %v306 = vunpack.c.h.b16 %v236
  %v307 = vunpack.c.l.b16 %v237
  %v308 = vunpack.c.l.b16 %v238
  %v309 = vunpack.c.h.b16 %v238
  %v310 = vunpack.c.l.b16 %v239
  %v311 = vunpack.c.l.b16 %v240
  %v312 = vunpack.c.h.b16 %v240
  %v313 = vunpack.c.l.b16 %v241
  %v314 = vunpack.c.l.b16 %v242
  %v315 = vunpack.c.h.b16 %v242
  %v316 = vunpack.c.l.b16 %v243
  %v317 = vunpack.c.l.b16 %v244
  %v318 = vunpack.c.h.b16 %v244
  %v319 = vunpack.c.l.b16 %v245
  %v320 = vunpack.c.l.b16 %v246
  %v321 = vunpack.c.h.b16 %v246
  %v322 = vunpack.c.l.b16 %v247
  %v323 = vunpack.c.l.b16 %v248
  %v324 = vunpack.c.h.b16 %v248
  %v325 = vunpack.c.l.b16 %v249
  %v326 = vunpack.c.l.b16 %v250
  %v327 = vunpack.c.h.b16 %v250
  %v328 = vunpack.c.l.b16 %v251
  %v329 = vunpack.c.l.b16 %v252
  %v330 = vunpack.c.h.b16 %v252
  %v331 = vunpack.c.l.b16 %v253
  %v332 = vunpack.c.l.b16 %v254
  %v333 = vunpack.c.h.b16 %v254
  %v334 = vunpack.c.l.b16 %v255
  %v335 = vunpack.c.l.b16 %v256
  %v336 = vunpack.c.h.b16 %v256
  %v337 = vunpack.c.l.b16 %v257
  %v338 = vunpack.c.l.b16 %v258
  %v339 = vunpack.c.h.b16 %v258
  %v340 = vunpack.c.l.b16 %v259
  %v341 = vunpack.c.l.b16 %v260
  %v342 = vunpack.c.h.b16 %v260
  %v343 = vunpack.c.l.b16 %v261
  %v344 = vunpack.c.l.b16 %v262
  %v345 = vunpack.c.h.b16 %v262
  %v346 = vunpack.c.l.b16 %v263
  %v347 = vpack.c.b16 %v302, %v299
  %v348 = vpack.c.b16 %v303, %v300
  %v349 = vpack.c.b16 %v304, %v301
  %v350 = vpack.c.b16 %v308, %v305
  %v351 = vpack.c.b16 %v309, %v306
  %v352 = vpack.c.b16 %v310, %v307
  %v353 = vpack.c.b16 %v314, %v311
  %v354 = vpack.c.b16 %v315, %v312
  %v355 = vpack.c.b16 %v316, %v313
  %v356 = vpack.c.b16 %v320, %v317
  %v357 = vpack.c.b16 %v321, %v318
  %v358 = vpack.c.b16 %v322, %v319
  %v359 = vpack.c.b16 %v326, %v323
  %v360 = vpack.c.b16 %v327, %v324
  %v361 = vpack.c.b16 %v328, %v325
  %v362 = vpack.c.b16 %v332, %v329
  %v363 = vpack.c.b16 %v333, %v330
  %v364 = vpack.c.b16 %v334, %v331
  %v365 = vpack.c.b16 %v338, %v335
  %v366 = vpack.c.b16 %v339, %v336
  %v367 = vpack.c.b16 %v340, %v337
  %v368 = vpack.c.b16 %v344, %v341
  %v369 = vpack.c.b16 %v345, %v342
  %v370 = vpack.c.b16 %v346, %v343
  %v396 = vperm.slane %v264, 0
  %v397 = vperm.slane %v264, 1
  %v398 = vperm.slane %v264, 2
  %402 = vmatpush.bf16.msra.mxu0 %v368
  %403 = vmatpush.bf16.msra.mxu0 %v365
  %404 = vmatpush.bf16.msra.mxu0 %v362
  %405 = vmatpush.bf16.msra.mxu0 %v359
  %406 = vmatpush.bf16.msra.mxu0 %v356
  %407 = vmatpush.bf16.msra.mxu0 %v353
  %408 = vmatpush.bf16.msra.mxu0 %v350
  %409 = vmatpush.bf16.msra.mxu0 %v347
  %410 = vmatmul.bf16.gmra.mxu0 0
  %v411 = vpop.f32.mrf.mxu0
  %v412 = vadd.f32 %v396, %v411
  %v413 = vpop.f32.mrf.mxu0
  %414 = vdwg.mxu0
  %415 = vmatpush.bf16.msra.mxu0 %v369
  %416 = vmatpush.bf16.msra.mxu0 %v366
  %417 = vmatpush.bf16.msra.mxu0 %v363
  %418 = vmatpush.bf16.msra.mxu0 %v360
  %419 = vmatpush.bf16.msra.mxu0 %v357
  %420 = vmatpush.bf16.msra.mxu0 %v354
  %421 = vmatpush.bf16.msra.mxu0 %v351
  %422 = vmatpush.bf16.msra.mxu0 %v348
  %423 = vmatmul.bf16.gmra.mxu0 0
  %v424 = vpop.f32.mrf.mxu0
  %v425 = vadd.f32 %v397, %v424
  %v426 = vpop.f32.mrf.mxu0
  %427 = vdwg.mxu0
  %428 = vmatpush.bf16.msra.mxu0 %v370
  %429 = vmatpush.bf16.msra.mxu0 %v367
  %430 = vmatpush.bf16.msra.mxu0 %v364
  %431 = vmatpush.bf16.msra.mxu0 %v361
  %432 = vmatpush.bf16.msra.mxu0 %v358
  %433 = vmatpush.bf16.msra.mxu0 %v355
  %434 = vmatpush.bf16.msra.mxu0 %v352
  %435 = vmatpush.bf16.msra.mxu0 %v349
  %436 = vmatmul.bf16.gmra.mxu0 0
  %v437 = vpop.f32.mrf.mxu0
  %v438 = vadd.f32 %v398, %v437
  %v439 = vpop.f32.mrf.mxu0
  %440 = vdwg.mxu0
  %v441 = vadd.f32 %v266, %v412
  %v442 = vxor.u32 %v441, 2147483648
  %v443 = vmul.f32 %v442, 1.442695
  %v444 = vpow.pop %v443
  %v445 = vadd.f32 %v444, 1.0
  %v446 = vrcp.pop %v445
  %v447 = vmul.f32 %v445, %v446
  %v448 = vsub.f32 1.0, %v447
  %v449 = vmul.f32 %v446, %v448
  %v450 = vadd.f32 %v446, %v449
  %vm451 = vweird.f32 %v445
  %vm452 = vweird.f32 %v446
  %vm453 = vmor %vm451, %vm452
  %v454 = vsel %vm453, %v446, %v450
  %v455 = vand.u32 2147483647, %v445
  %vm456 = vcmp.eq.f32.partialorder %v455, 8.507059e+37
  %v457 = vand.u32 %v445, 2147483648
  %v458 = vor.u32 1.1754944e-38, %v457
  %v459 = vsel %vm456, %v458, %v454
  %v460 = vmul.f32 1.0, %v459
  %v462 = vrot.slane %v266, 1
  %v464 = vadd.f32 %v462, %v425
  %v465 = vxor.u32 %v464, 2147483648
  %v466 = vmul.f32 %v465, 1.442695
  %v467 = vpow.pop %v466
  %v468 = vadd.f32 %v467, 1.0
  %v469 = vrcp.pop %v468
  %v470 = vmul.f32 %v468, %v469
  %v471 = vsub.f32 1.0, %v470
  %v472 = vmul.f32 %v469, %v471
  %v473 = vadd.f32 %v469, %v472
  %vm474 = vweird.f32 %v468
  %vm475 = vweird.f32 %v469
  %vm476 = vmor %vm474, %vm475
  %v477 = vsel %vm476, %v469, %v473
  %v478 = vand.u32 2147483647, %v468
  %vm479 = vcmp.eq.f32.partialorder %v478, 8.507059e+37
  %v480 = vand.u32 %v468, 2147483648
  %v481 = vor.u32 1.1754944e-38, %v480
  %v482 = vsel %vm479, %v481, %v477
  %v483 = vmul.f32 1.0, %v482
  %v484 = vmul.f32 %v460, %v438
  %v485 = vrot.slane %v266, 2
  %v487 = vadd.f32 %v485, %v484
  %v488 = vtanh.pop %v487
  %v489 = vsub.f32 1.0, %v483
  %v490 = vmul.f32 %v489, %v488
  %v491 = vmul.f32 %v483, 0.0
  %v492 = vadd.f32 %v490, %v491
  %vm493 = vcmp.gt.f32.partialorder %v492, 0.0
  %v494 = vmul.f32 %v492, 1.442695
  %v495 = vpow.pop %v494
  %v496 = vsub.f32 %v495, 1.0
  %v497 = vmul.f32 %v496, 1.6732632
  %v498 = vsel %vm493, %v492, %v497
  %v499 = vmul.f32 %v498, 1.050701
  %500 = vst [vmem:[#allocation3] sm:$0x1] %v499
  %s501 = scalar_lea.vmem [#allocation2], 1
  %v502 = vld [vmem:[%s501] ss:$8 sm:$0x7]
  %v503 = vpack.c.bf16 %v492, %v492
  %504 = vmatpush.bf16.msra.mxu0 %v368
  %505 = vmatpush.bf16.msra.mxu0 %v365
  %506 = vmatpush.bf16.msra.mxu0 %v362
  %507 = vmatpush.bf16.msra.mxu0 %v359
  %508 = vmatpush.bf16.msra.mxu0 %v356
  %509 = vmatpush.bf16.msra.mxu0 %v353
  %510 = vmatpush.bf16.msra.mxu0 %v350
  %511 = vmatpush.bf16.msra.mxu0 %v347
  %512 = vmatmul.bf16.gmra.mxu0 %v503
  %v513 = vpop.f32.mrf.mxu0
  %v514 = vadd.f32 %v396, %v513
  %v515 = vpop.f32.mrf.mxu0
  %516 = vdwg.mxu0
  %517 = vmatpush.bf16.msra.mxu0 %v369
  %518 = vmatpush.bf16.msra.mxu0 %v366
  %519 = vmatpush.bf16.msra.mxu0 %v363
  %520 = vmatpush.bf16.msra.mxu0 %v360
  %521 = vmatpush.bf16.msra.mxu0 %v357
  %522 = vmatpush.bf16.msra.mxu0 %v354
  %523 = vmatpush.bf16.msra.mxu0 %v351
  %524 = vmatpush.bf16.msra.mxu0 %v348
  %525 = vmatmul.bf16.gmra.mxu0 %v503
  %v526 = vpop.f32.mrf.mxu0
  %v527 = vadd.f32 %v397, %v526
  %v528 = vpop.f32.mrf.mxu0
  %529 = vdwg.mxu0
  %530 = vmatpush.bf16.msra.mxu0 %v370
  %531 = vmatpush.bf16.msra.mxu0 %v367
  %532 = vmatpush.bf16.msra.mxu0 %v364
  %533 = vmatpush.bf16.msra.mxu0 %v361
  %534 = vmatpush.bf16.msra.mxu0 %v358
  %535 = vmatpush.bf16.msra.mxu0 %v355
  %536 = vmatpush.bf16.msra.mxu0 %v352
  %537 = vmatpush.bf16.msra.mxu0 %v349
  %538 = vmatmul.bf16.gmra.mxu0 %v503
  %v539 = vpop.f32.mrf.mxu0
  %v540 = vadd.f32 %v398, %v539
  %v541 = vpop.f32.mrf.mxu0
  %542 = vdwg.mxu0
  %v543 = vadd.f32 %v502, %v514
  %v544 = vxor.u32 %v543, 2147483648
  %v545 = vmul.f32 %v544, 1.442695
  %v546 = vpow.pop %v545
  %v547 = vadd.f32 %v546, 1.0
  %v548 = vrcp.pop %v547
  %v549 = vmul.f32 %v547, %v548
  %v550 = vsub.f32 1.0, %v549
  %v551 = vmul.f32 %v548, %v550
  %v552 = vadd.f32 %v548, %v551
  %vm553 = vweird.f32 %v547
  %vm554 = vweird.f32 %v548
  %vm555 = vmor %vm553, %vm554
  %v556 = vsel %vm555, %v548, %v552
  %v557 = vand.u32 2147483647, %v547
  %vm558 = vcmp.eq.f32.partialorder %v557, 8.507059e+37
  %v559 = vand.u32 %v547, 2147483648
  %v560 = vor.u32 1.1754944e-38, %v559
  %v561 = vsel %vm558, %v560, %v556
  %v562 = vmul.f32 1.0, %v561
  %v564 = vrot.slane %v502, 1
  %v566 = vadd.f32 %v564, %v527
  %v567 = vxor.u32 %v566, 2147483648
  %v568 = vmul.f32 %v567, 1.442695
  %v569 = vpow.pop %v568
  %v570 = vadd.f32 %v569, 1.0
  %v571 = vrcp.pop %v570
  %v572 = vmul.f32 %v570, %v571
  %v573 = vsub.f32 1.0, %v572
  %v574 = vmul.f32 %v571, %v573
  %v575 = vadd.f32 %v571, %v574
  %vm576 = vweird.f32 %v570
  %vm577 = vweird.f32 %v571
  %vm578 = vmor %vm576, %vm577
  %v579 = vsel %vm578, %v571, %v575
  %v580 = vand.u32 2147483647, %v570
  %vm581 = vcmp.eq.f32.partialorder %v580, 8.507059e+37
  %v582 = vand.u32 %v570, 2147483648
  %v583 = vor.u32 1.1754944e-38, %v582
  %v584 = vsel %vm581, %v583, %v579
  %v585 = vmul.f32 1.0, %v584
  %v586 = vmul.f32 %v562, %v540
  %v587 = vrot.slane %v502, 2
  %v589 = vadd.f32 %v587, %v586
  %v590 = vtanh.pop %v589
  %v591 = vsub.f32 1.0, %v585
  %v592 = vmul.f32 %v591, %v590
  %v593 = vmul.f32 %v585, %v492
  %v594 = vadd.f32 %v592, %v593
  %vm595 = vcmp.gt.f32.partialorder %v594, 0.0
  %v596 = vmul.f32 %v594, 1.442695
  %v597 = vpow.pop %v596
  %v598 = vsub.f32 %v597, 1.0
  %v599 = vmul.f32 %v598, 1.6732632
  %v600 = vsel %vm595, %v594, %v599
  %v601 = vmul.f32 %v600, 1.050701
  %602 = vst [vmem:[#allocation3 + $0x1] sm:$0x1] %v601
  %s603 = scalar_lea.vmem [#allocation2], 2
  %v604 = vld [vmem:[%s603] ss:$8 sm:$0x7]
  %v605 = vpack.c.bf16 %v594, %v594
  %606 = vmatpush.bf16.msra.mxu0 %v368
  %607 = vmatpush.bf16.msra.mxu0 %v365
  %608 = vmatpush.bf16.msra.mxu0 %v362
  %609 = vmatpush.bf16.msra.mxu0 %v359
  %610 = vmatpush.bf16.msra.mxu0 %v356
  %611 = vmatpush.bf16.msra.mxu0 %v353
  %612 = vmatpush.bf16.msra.mxu0 %v350
  %613 = vmatpush.bf16.msra.mxu0 %v347
  %614 = vmatmul.bf16.gmra.mxu0 %v605
  %v615 = vpop.f32.mrf.mxu0
  %v616 = vadd.f32 %v396, %v615
  %v617 = vpop.f32.mrf.mxu0
  %618 = vdwg.mxu0
  %619 = vmatpush.bf16.msra.mxu0 %v369
  %620 = vmatpush.bf16.msra.mxu0 %v366
  %621 = vmatpush.bf16.msra.mxu0 %v363
  %622 = vmatpush.bf16.msra.mxu0 %v360
  %623 = vmatpush.bf16.msra.mxu0 %v357
  %624 = vmatpush.bf16.msra.mxu0 %v354
  %625 = vmatpush.bf16.msra.mxu0 %v351
  %626 = vmatpush.bf16.msra.mxu0 %v348
  %627 = vmatmul.bf16.gmra.mxu0 %v605
  %v628 = vpop.f32.mrf.mxu0
  %v629 = vadd.f32 %v397, %v628
  %v630 = vpop.f32.mrf.mxu0
  %631 = vdwg.mxu0
  %632 = vmatpush.bf16.msra.mxu0 %v370
  %633 = vmatpush.bf16.msra.mxu0 %v367
  %634 = vmatpush.bf16.msra.mxu0 %v364
  %635 = vmatpush.bf16.msra.mxu0 %v361
  %636 = vmatpush.bf16.msra.mxu0 %v358
  %637 = vmatpush.bf16.msra.mxu0 %v355
  %638 = vmatpush.bf16.msra.mxu0 %v352
  %639 = vmatpush.bf16.msra.mxu0 %v349
  %640 = vmatmul.bf16.gmra.mxu0 %v605
  %v641 = vpop.f32.mrf.mxu0
  %v642 = vadd.f32 %v398, %v641
  %v643 = vpop.f32.mrf.mxu0
  %644 = vdwg.mxu0
  %v645 = vadd.f32 %v604, %v616
  %v646 = vxor.u32 %v645, 2147483648
  %v647 = vmul.f32 %v646, 1.442695
  %v648 = vpow.pop %v647
  %v649 = vadd.f32 %v648, 1.0
  %v650 = vrcp.pop %v649
  %v651 = vmul.f32 %v649, %v650
  %v652 = vsub.f32 1.0, %v651
  %v653 = vmul.f32 %v650, %v652
  %v654 = vadd.f32 %v650, %v653
  %vm655 = vweird.f32 %v649
  %vm656 = vweird.f32 %v650
  %vm657 = vmor %vm655, %vm656
  %v658 = vsel %vm657, %v650, %v654
  %v659 = vand.u32 2147483647, %v649
  %vm660 = vcmp.eq.f32.partialorder %v659, 8.507059e+37
  %v661 = vand.u32 %v649, 2147483648
  %v662 = vor.u32 1.1754944e-38, %v661
  %v663 = vsel %vm660, %v662, %v658
  %v664 = vmul.f32 1.0, %v663
  %v666 = vrot.slane %v604, 1
  %v668 = vadd.f32 %v666, %v629
  %v669 = vxor.u32 %v668, 2147483648
  %v670 = vmul.f32 %v669, 1.442695
  %v671 = vpow.pop %v670
  %v672 = vadd.f32 %v671, 1.0
  %v673 = vrcp.pop %v672
  %v674 = vmul.f32 %v672, %v673
  %v675 = vsub.f32 1.0, %v674
  %v676 = vmul.f32 %v673, %v675
  %v677 = vadd.f32 %v673, %v676
  %vm678 = vweird.f32 %v672
  %vm679 = vweird.f32 %v673
  %vm680 = vmor %vm678, %vm679
  %v681 = vsel %vm680, %v673, %v677
  %v682 = vand.u32 2147483647, %v672
  %vm683 = vcmp.eq.f32.partialorder %v682, 8.507059e+37
  %v684 = vand.u32 %v672, 2147483648
  %v685 = vor.u32 1.1754944e-38, %v684
  %v686 = vsel %vm683, %v685, %v681
  %v687 = vmul.f32 1.0, %v686
  %v688 = vmul.f32 %v664, %v642
  %v689 = vrot.slane %v604, 2
  %v691 = vadd.f32 %v689, %v688
  %v692 = vtanh.pop %v691
  %v693 = vsub.f32 1.0, %v687
  %v694 = vmul.f32 %v693, %v692
  %v695 = vmul.f32 %v687, %v594
  %v696 = vadd.f32 %v694, %v695
  %vm697 = vcmp.gt.f32.partialorder %v696, 0.0
  %v698 = vmul.f32 %v696, 1.442695
  %v699 = vpow.pop %v698
  %v700 = vsub.f32 %v699, 1.0
  %v701 = vmul.f32 %v700, 1.6732632
  %v702 = vsel %vm697, %v696, %v701
  %v703 = vmul.f32 %v702, 1.050701
  %704 = vst [vmem:[#allocation3 + $0x2] sm:$0x1] %v703
  %s705 = scalar_lea.vmem [#allocation2], 3
  %v706 = vld [vmem:[%s705] ss:$8 sm:$0x7]
  %v707 = vpack.c.bf16 %v696, %v696
  %708 = vmatpush.bf16.msra.mxu0 %v368
  %709 = vmatpush.bf16.msra.mxu0 %v365
  %710 = vmatpush.bf16.msra.mxu0 %v362
  %711 = vmatpush.bf16.msra.mxu0 %v359
  %712 = vmatpush.bf16.msra.mxu0 %v356
  %713 = vmatpush.bf16.msra.mxu0 %v353
  %714 = vmatpush.bf16.msra.mxu0 %v350
  %715 = vmatpush.bf16.msra.mxu0 %v347
  %716 = vmatmul.bf16.gmra.mxu0 %v707
  %v717 = vpop.f32.mrf.mxu0
  %v718 = vadd.f32 %v396, %v717
  %v719 = vpop.f32.mrf.mxu0
  %720 = vdwg.mxu0
  %721 = vmatpush.bf16.msra.mxu0 %v369
  %722 = vmatpush.bf16.msra.mxu0 %v366
  %723 = vmatpush.bf16.msra.mxu0 %v363
  %724 = vmatpush.bf16.msra.mxu0 %v360
  %725 = vmatpush.bf16.msra.mxu0 %v357
  %726 = vmatpush.bf16.msra.mxu0 %v354
  %727 = vmatpush.bf16.msra.mxu0 %v351
  %728 = vmatpush.bf16.msra.mxu0 %v348
  %729 = vmatmul.bf16.gmra.mxu0 %v707
  %v730 = vpop.f32.mrf.mxu0
  %v731 = vadd.f32 %v397, %v730
  %v732 = vpop.f32.mrf.mxu0
  %733 = vdwg.mxu0
  %734 = vmatpush.bf16.msra.mxu0 %v370
  %735 = vmatpush.bf16.msra.mxu0 %v367
  %736 = vmatpush.bf16.msra.mxu0 %v364
  %737 = vmatpush.bf16.msra.mxu0 %v361
  %738 = vmatpush.bf16.msra.mxu0 %v358
  %739 = vmatpush.bf16.msra.mxu0 %v355
  %740 = vmatpush.bf16.msra.mxu0 %v352
  %741 = vmatpush.bf16.msra.mxu0 %v349
  %742 = vmatmul.bf16.gmra.mxu0 %v707
  %v743 = vpop.f32.mrf.mxu0
  %v744 = vadd.f32 %v398, %v743
  %v745 = vpop.f32.mrf.mxu0
  %746 = vdwg.mxu0
  %v747 = vadd.f32 %v706, %v718
  %v748 = vxor.u32 %v747, 2147483648
  %v749 = vmul.f32 %v748, 1.442695
  %v750 = vpow.pop %v749
  %v751 = vadd.f32 %v750, 1.0
  %v752 = vrcp.pop %v751
  %v753 = vmul.f32 %v751, %v752
  %v754 = vsub.f32 1.0, %v753
  %v755 = vmul.f32 %v752, %v754
  %v756 = vadd.f32 %v752, %v755
  %vm757 = vweird.f32 %v751
  %vm758 = vweird.f32 %v752
  %vm759 = vmor %vm757, %vm758
  %v760 = vsel %vm759, %v752, %v756
  %v761 = vand.u32 2147483647, %v751
  %vm762 = vcmp.eq.f32.partialorder %v761, 8.507059e+37
  %v763 = vand.u32 %v751, 2147483648
  %v764 = vor.u32 1.1754944e-38, %v763
  %v765 = vsel %vm762, %v764, %v760
  %v766 = vmul.f32 1.0, %v765
  %v768 = vrot.slane %v706, 1
  %v770 = vadd.f32 %v768, %v731
  %v771 = vxor.u32 %v770, 2147483648
  %v772 = vmul.f32 %v771, 1.442695
  %v773 = vpow.pop %v772
  %v774 = vadd.f32 %v773, 1.0
  %v775 = vrcp.pop %v774
  %v776 = vmul.f32 %v774, %v775
  %v777 = vsub.f32 1.0, %v776
  %v778 = vmul.f32 %v775, %v777
  %v779 = vadd.f32 %v775, %v778
  %vm780 = vweird.f32 %v774
  %vm781 = vweird.f32 %v775
  %vm782 = vmor %vm780, %vm781
  %v783 = vsel %vm782, %v775, %v779
  %v784 = vand.u32 2147483647, %v774
  %vm785 = vcmp.eq.f32.partialorder %v784, 8.507059e+37
  %v786 = vand.u32 %v774, 2147483648
  %v787 = vor.u32 1.1754944e-38, %v786
  %v788 = vsel %vm785, %v787, %v783
  %v789 = vmul.f32 1.0, %v788
  %v790 = vmul.f32 %v766, %v744
  %v791 = vrot.slane %v706, 2
  %v793 = vadd.f32 %v791, %v790
  %v794 = vtanh.pop %v793
  %v795 = vsub.f32 1.0, %v789
  %v796 = vmul.f32 %v795, %v794
  %v797 = vmul.f32 %v789, %v696
  %v798 = vadd.f32 %v796, %v797
  %vm799 = vcmp.gt.f32.partialorder %v798, 0.0
  %v800 = vmul.f32 %v798, 1.442695
  %v801 = vpow.pop %v800
  %v802 = vsub.f32 %v801, 1.0
  %v803 = vmul.f32 %v802, 1.6732632
  %v804 = vsel %vm799, %v798, %v803
  %v805 = vmul.f32 %v804, 1.050701
  %806 = vst [vmem:[#allocation3 + $0x3] sm:$0x1] %v805
  %s807 = scalar_lea.vmem [#allocation2], 4
  %v808 = vld [vmem:[%s807] ss:$8 sm:$0x7]
  %v809 = vpack.c.bf16 %v798, %v798
  %810 = vmatpush.bf16.msra.mxu0 %v368
  %811 = vmatpush.bf16.msra.mxu0 %v365
  %812 = vmatpush.bf16.msra.mxu0 %v362
  %813 = vmatpush.bf16.msra.mxu0 %v359
  %814 = vmatpush.bf16.msra.mxu0 %v356
  %815 = vmatpush.bf16.msra.mxu0 %v353
  %816 = vmatpush.bf16.msra.mxu0 %v350
  %817 = vmatpush.bf16.msra.mxu0 %v347
  %818 = vmatmul.bf16.gmra.mxu0 %v809
  %v819 = vpop.f32.mrf.mxu0
  %v820 = vadd.f32 %v396, %v819
  %v821 = vpop.f32.mrf.mxu0
  %822 = vdwg.mxu0
  %823 = vmatpush.bf16.msra.mxu0 %v369
  %824 = vmatpush.bf16.msra.mxu0 %v366
  %825 = vmatpush.bf16.msra.mxu0 %v363
  %826 = vmatpush.bf16.msra.mxu0 %v360
  %827 = vmatpush.bf16.msra.mxu0 %v357
  %828 = vmatpush.bf16.msra.mxu0 %v354
  %829 = vmatpush.bf16.msra.mxu0 %v351
  %830 = vmatpush.bf16.msra.mxu0 %v348
  %831 = vmatmul.bf16.gmra.mxu0 %v809
  %v832 = vpop.f32.mrf.mxu0
  %v833 = vadd.f32 %v397, %v832
  %v834 = vpop.f32.mrf.mxu0
  %835 = vdwg.mxu0
  %836 = vmatpush.bf16.msra.mxu0 %v370
  %837 = vmatpush.bf16.msra.mxu0 %v367
  %838 = vmatpush.bf16.msra.mxu0 %v364
  %839 = vmatpush.bf16.msra.mxu0 %v361
  %840 = vmatpush.bf16.msra.mxu0 %v358
  %841 = vmatpush.bf16.msra.mxu0 %v355
  %842 = vmatpush.bf16.msra.mxu0 %v352
  %843 = vmatpush.bf16.msra.mxu0 %v349
  %844 = vmatmul.bf16.gmra.mxu0 %v809
  %v845 = vpop.f32.mrf.mxu0
  %v846 = vadd.f32 %v398, %v845
  %v847 = vpop.f32.mrf.mxu0
  %848 = vdwg.mxu0
  %v849 = vadd.f32 %v808, %v820
  %v850 = vxor.u32 %v849, 2147483648
  %v851 = vmul.f32 %v850, 1.442695
  %v852 = vpow.pop %v851
  %v853 = vadd.f32 %v852, 1.0
  %v854 = vrcp.pop %v853
  %v855 = vmul.f32 %v853, %v854
  %v856 = vsub.f32 1.0, %v855
  %v857 = vmul.f32 %v854, %v856
  %v858 = vadd.f32 %v854, %v857
  %vm859 = vweird.f32 %v853
  %vm860 = vweird.f32 %v854
  %vm861 = vmor %vm859, %vm860
  %v862 = vsel %vm861, %v854, %v858
  %v863 = vand.u32 2147483647, %v853
  %vm864 = vcmp.eq.f32.partialorder %v863, 8.507059e+37
  %v865 = vand.u32 %v853, 2147483648
  %v866 = vor.u32 1.1754944e-38, %v865
  %v867 = vsel %vm864, %v866, %v862
  %v868 = vmul.f32 1.0, %v867
  %v870 = vrot.slane %v808, 1
  %v872 = vadd.f32 %v870, %v833
  %v873 = vxor.u32 %v872, 2147483648
  %v874 = vmul.f32 %v873, 1.442695
  %v875 = vpow.pop %v874
  %v876 = vadd.f32 %v875, 1.0
  %v877 = vrcp.pop %v876
  %v878 = vmul.f32 %v876, %v877
  %v879 = vsub.f32 1.0, %v878
  %v880 = vmul.f32 %v877, %v879
  %v881 = vadd.f32 %v877, %v880
  %vm882 = vweird.f32 %v876
  %vm883 = vweird.f32 %v877
  %vm884 = vmor %vm882, %vm883
  %v885 = vsel %vm884, %v877, %v881
  %v886 = vand.u32 2147483647, %v876
  %vm887 = vcmp.eq.f32.partialorder %v886, 8.507059e+37
  %v888 = vand.u32 %v876, 2147483648
  %v889 = vor.u32 1.1754944e-38, %v888
  %v890 = vsel %vm887, %v889, %v885
  %v891 = vmul.f32 1.0, %v890
  %v892 = vmul.f32 %v868, %v846
  %v893 = vrot.slane %v808, 2
  %v895 = vadd.f32 %v893, %v892
  %v896 = vtanh.pop %v895
  %v897 = vsub.f32 1.0, %v891
  %v898 = vmul.f32 %v897, %v896
  %v899 = vmul.f32 %v891, %v798
  %v900 = vadd.f32 %v898, %v899
  %vm901 = vcmp.gt.f32.partialorder %v900, 0.0
  %v902 = vmul.f32 %v900, 1.442695
  %v903 = vpow.pop %v902
  %v904 = vsub.f32 %v903, 1.0
  %v905 = vmul.f32 %v904, 1.6732632
  %v906 = vsel %vm901, %v900, %v905
  %v907 = vmul.f32 %v906, 1.050701
  %908 = vst [vmem:[#allocation3 + $0x4] sm:$0x1] %v907
  %s909 = scalar_lea.vmem [#allocation2], 5
  %v910 = vld [vmem:[%s909] ss:$8 sm:$0x7]
  %v911 = vpack.c.bf16 %v900, %v900
  %912 = vmatpush.bf16.msra.mxu0 %v368
  %913 = vmatpush.bf16.msra.mxu0 %v365
  %914 = vmatpush.bf16.msra.mxu0 %v362
  %915 = vmatpush.bf16.msra.mxu0 %v359
  %916 = vmatpush.bf16.msra.mxu0 %v356
  %917 = vmatpush.bf16.msra.mxu0 %v353
  %918 = vmatpush.bf16.msra.mxu0 %v350
  %919 = vmatpush.bf16.msra.mxu0 %v347
  %920 = vmatmul.bf16.gmra.mxu0 %v911
  %v921 = vpop.f32.mrf.mxu0
  %v922 = vadd.f32 %v396, %v921
  %v923 = vpop.f32.mrf.mxu0
  %924 = vdwg.mxu0
  %925 = vmatpush.bf16.msra.mxu0 %v369
  %926 = vmatpush.bf16.msra.mxu0 %v366
  %927 = vmatpush.bf16.msra.mxu0 %v363
  %928 = vmatpush.bf16.msra.mxu0 %v360
  %929 = vmatpush.bf16.msra.mxu0 %v357
  %930 = vmatpush.bf16.msra.mxu0 %v354
  %931 = vmatpush.bf16.msra.mxu0 %v351
  %932 = vmatpush.bf16.msra.mxu0 %v348
  %933 = vmatmul.bf16.gmra.mxu0 %v911
  %v934 = vpop.f32.mrf.mxu0
  %v935 = vadd.f32 %v397, %v934
  %v936 = vpop.f32.mrf.mxu0
  %937 = vdwg.mxu0
  %938 = vmatpush.bf16.msra.mxu0 %v370
  %939 = vmatpush.bf16.msra.mxu0 %v367
  %940 = vmatpush.bf16.msra.mxu0 %v364
  %941 = vmatpush.bf16.msra.mxu0 %v361
  %942 = vmatpush.bf16.msra.mxu0 %v358
  %943 = vmatpush.bf16.msra.mxu0 %v355
  %944 = vmatpush.bf16.msra.mxu0 %v352
  %945 = vmatpush.bf16.msra.mxu0 %v349
  %946 = vmatmul.bf16.gmra.mxu0 %v911
  %v947 = vpop.f32.mrf.mxu0
  %v948 = vadd.f32 %v398, %v947
  %v949 = vpop.f32.mrf.mxu0
  %950 = vdwg.mxu0
  %v951 = vadd.f32 %v910, %v922
  %v952 = vxor.u32 %v951, 2147483648
  %v953 = vmul.f32 %v952, 1.442695
  %v954 = vpow.pop %v953
  %v955 = vadd.f32 %v954, 1.0
  %v956 = vrcp.pop %v955
  %v957 = vmul.f32 %v955, %v956
  %v958 = vsub.f32 1.0, %v957
  %v959 = vmul.f32 %v956, %v958
  %v960 = vadd.f32 %v956, %v959
  %vm961 = vweird.f32 %v955
  %vm962 = vweird.f32 %v956
  %vm963 = vmor %vm961, %vm962
  %v964 = vsel %vm963, %v956, %v960
  %v965 = vand.u32 2147483647, %v955
  %vm966 = vcmp.eq.f32.partialorder %v965, 8.507059e+37
  %v967 = vand.u32 %v955, 2147483648
  %v968 = vor.u32 1.1754944e-38, %v967
  %v969 = vsel %vm966, %v968, %v964
  %v970 = vmul.f32 1.0, %v969
  %v972 = vrot.slane %v910, 1
  %v974 = vadd.f32 %v972, %v935
  %v975 = vxor.u32 %v974, 2147483648
  %v976 = vmul.f32 %v975, 1.442695
  %v977 = vpow.pop %v976
  %v978 = vadd.f32 %v977, 1.0
  %v979 = vrcp.pop %v978
  %v980 = vmul.f32 %v978, %v979
  %v981 = vsub.f32 1.0, %v980
  %v982 = vmul.f32 %v979, %v981
  %v983 = vadd.f32 %v979, %v982
  %vm984 = vweird.f32 %v978
  %vm985 = vweird.f32 %v979
  %vm986 = vmor %vm984, %vm985
  %v987 = vsel %vm986, %v979, %v983
  %v988 = vand.u32 2147483647, %v978
  %vm989 = vcmp.eq.f32.partialorder %v988, 8.507059e+37
  %v990 = vand.u32 %v978, 2147483648
  %v991 = vor.u32 1.1754944e-38, %v990
  %v992 = vsel %vm989, %v991, %v987
  %v993 = vmul.f32 1.0, %v992
  %v994 = vmul.f32 %v970, %v948
  %v995 = vrot.slane %v910, 2
  %v997 = vadd.f32 %v995, %v994
  %v998 = vtanh.pop %v997
  %v999 = vsub.f32 1.0, %v993
  %v1000 = vmul.f32 %v999, %v998
  %v1001 = vmul.f32 %v993, %v900
  %v1002 = vadd.f32 %v1000, %v1001
  %vm1003 = vcmp.gt.f32.partialorder %v1002, 0.0
  %v1004 = vmul.f32 %v1002, 1.442695
  %v1005 = vpow.pop %v1004
  %v1006 = vsub.f32 %v1005, 1.0
  %v1007 = vmul.f32 %v1006, 1.6732632
  %v1008 = vsel %vm1003, %v1002, %v1007
  %v1009 = vmul.f32 %v1008, 1.050701
  %1010 = vst [vmem:[#allocation3 + $0x5] sm:$0x1] %v1009
  %s1011 = scalar_lea.vmem [#allocation2], 6
  %v1012 = vld [vmem:[%s1011] ss:$8 sm:$0x7]
  %v1013 = vpack.c.bf16 %v1002, %v1002
  %1014 = vmatpush.bf16.msra.mxu0 %v368
  %1015 = vmatpush.bf16.msra.mxu0 %v365
  %1016 = vmatpush.bf16.msra.mxu0 %v362
  %1017 = vmatpush.bf16.msra.mxu0 %v359
  %1018 = vmatpush.bf16.msra.mxu0 %v356
  %1019 = vmatpush.bf16.msra.mxu0 %v353
  %1020 = vmatpush.bf16.msra.mxu0 %v350
  %1021 = vmatpush.bf16.msra.mxu0 %v347
  %1022 = vmatmul.bf16.gmra.mxu0 %v1013
  %v1023 = vpop.f32.mrf.mxu0
  %v1024 = vadd.f32 %v396, %v1023
  %v1025 = vpop.f32.mrf.mxu0
  %1026 = vdwg.mxu0
  %1027 = vmatpush.bf16.msra.mxu0 %v369
  %1028 = vmatpush.bf16.msra.mxu0 %v366
  %1029 = vmatpush.bf16.msra.mxu0 %v363
  %1030 = vmatpush.bf16.msra.mxu0 %v360
  %1031 = vmatpush.bf16.msra.mxu0 %v357
  %1032 = vmatpush.bf16.msra.mxu0 %v354
  %1033 = vmatpush.bf16.msra.mxu0 %v351
  %1034 = vmatpush.bf16.msra.mxu0 %v348
  %1035 = vmatmul.bf16.gmra.mxu0 %v1013
  %v1036 = vpop.f32.mrf.mxu0
  %v1037 = vadd.f32 %v397, %v1036
  %v1038 = vpop.f32.mrf.mxu0
  %1039 = vdwg.mxu0
  %1040 = vmatpush.bf16.msra.mxu0 %v370
  %1041 = vmatpush.bf16.msra.mxu0 %v367
  %1042 = vmatpush.bf16.msra.mxu0 %v364
  %1043 = vmatpush.bf16.msra.mxu0 %v361
  %1044 = vmatpush.bf16.msra.mxu0 %v358
  %1045 = vmatpush.bf16.msra.mxu0 %v355
  %1046 = vmatpush.bf16.msra.mxu0 %v352
  %1047 = vmatpush.bf16.msra.mxu0 %v349
  %1048 = vmatmul.bf16.gmra.mxu0 %v1013
  %v1049 = vpop.f32.mrf.mxu0
  %v1050 = vadd.f32 %v398, %v1049
  %v1051 = vpop.f32.mrf.mxu0
  %1052 = vdwg.mxu0
  %v1053 = vadd.f32 %v1012, %v1024
  %v1054 = vxor.u32 %v1053, 2147483648
  %v1055 = vmul.f32 %v1054, 1.442695
  %v1056 = vpow.pop %v1055
  %v1057 = vadd.f32 %v1056, 1.0
  %v1058 = vrcp.pop %v1057
  %v1059 = vmul.f32 %v1057, %v1058
  %v1060 = vsub.f32 1.0, %v1059
  %v1061 = vmul.f32 %v1058, %v1060
  %v1062 = vadd.f32 %v1058, %v1061
  %vm1063 = vweird.f32 %v1057
  %vm1064 = vweird.f32 %v1058
  %vm1065 = vmor %vm1063, %vm1064
  %v1066 = vsel %vm1065, %v1058, %v1062
  %v1067 = vand.u32 2147483647, %v1057
  %vm1068 = vcmp.eq.f32.partialorder %v1067, 8.507059e+37
  %v1069 = vand.u32 %v1057, 2147483648
  %v1070 = vor.u32 1.1754944e-38, %v1069
  %v1071 = vsel %vm1068, %v1070, %v1066
  %v1072 = vmul.f32 1.0, %v1071
  %v1074 = vrot.slane %v1012, 1
  %v1076 = vadd.f32 %v1074, %v1037
  %v1077 = vxor.u32 %v1076, 2147483648
  %v1078 = vmul.f32 %v1077, 1.442695
  %v1079 = vpow.pop %v1078
  %v1080 = vadd.f32 %v1079, 1.0
  %v1081 = vrcp.pop %v1080
  %v1082 = vmul.f32 %v1080, %v1081
  %v1083 = vsub.f32 1.0, %v1082
  %v1084 = vmul.f32 %v1081, %v1083
  %v1085 = vadd.f32 %v1081, %v1084
  %vm1086 = vweird.f32 %v1080
  %vm1087 = vweird.f32 %v1081
  %vm1088 = vmor %vm1086, %vm1087
  %v1089 = vsel %vm1088, %v1081, %v1085
  %v1090 = vand.u32 2147483647, %v1080
  %vm1091 = vcmp.eq.f32.partialorder %v1090, 8.507059e+37
  %v1092 = vand.u32 %v1080, 2147483648
  %v1093 = vor.u32 1.1754944e-38, %v1092
  %v1094 = vsel %vm1091, %v1093, %v1089
  %v1095 = vmul.f32 1.0, %v1094
  %v1096 = vmul.f32 %v1072, %v1050
  %v1097 = vrot.slane %v1012, 2
  %v1099 = vadd.f32 %v1097, %v1096
  %v1100 = vtanh.pop %v1099
  %v1101 = vsub.f32 1.0, %v1095
  %v1102 = vmul.f32 %v1101, %v1100
  %v1103 = vmul.f32 %v1095, %v1002
  %v1104 = vadd.f32 %v1102, %v1103
  %vm1105 = vcmp.gt.f32.partialorder %v1104, 0.0
  %v1106 = vmul.f32 %v1104, 1.442695
  %v1107 = vpow.pop %v1106
  %v1108 = vsub.f32 %v1107, 1.0
  %v1109 = vmul.f32 %v1108, 1.6732632
  %v1110 = vsel %vm1105, %v1104, %v1109
  %v1111 = vmul.f32 %v1110, 1.050701
  %1112 = vst [vmem:[#allocation3 + $0x6] sm:$0x1] %v1111
  %s1113 = scalar_lea.vmem [#allocation2], 7
  %v1114 = vld [vmem:[%s1113] ss:$8 sm:$0x7]
  %v1115 = vpack.c.bf16 %v1104, %v1104
  %1116 = vmatpush.bf16.msra.mxu0 %v368
  %1117 = vmatpush.bf16.msra.mxu0 %v365
  %1118 = vmatpush.bf16.msra.mxu0 %v362
  %1119 = vmatpush.bf16.msra.mxu0 %v359
  %1120 = vmatpush.bf16.msra.mxu0 %v356
  %1121 = vmatpush.bf16.msra.mxu0 %v353
  %1122 = vmatpush.bf16.msra.mxu0 %v350
  %1123 = vmatpush.bf16.msra.mxu0 %v347
  %1124 = vmatmul.bf16.gmra.mxu0 %v1115
  %v1125 = vpop.f32.mrf.mxu0
  %v1126 = vadd.f32 %v396, %v1125
  %v1127 = vpop.f32.mrf.mxu0
  %1128 = vdwg.mxu0
  %1129 = vmatpush.bf16.msra.mxu0 %v369
  %1130 = vmatpush.bf16.msra.mxu0 %v366
  %1131 = vmatpush.bf16.msra.mxu0 %v363
  %1132 = vmatpush.bf16.msra.mxu0 %v360
  %1133 = vmatpush.bf16.msra.mxu0 %v357
  %1134 = vmatpush.bf16.msra.mxu0 %v354
  %1135 = vmatpush.bf16.msra.mxu0 %v351
  %1136 = vmatpush.bf16.msra.mxu0 %v348
  %1137 = vmatmul.bf16.gmra.mxu0 %v1115
  %v1138 = vpop.f32.mrf.mxu0
  %v1139 = vadd.f32 %v397, %v1138
  %v1140 = vpop.f32.mrf.mxu0
  %1141 = vdwg.mxu0
  %1142 = vmatpush.bf16.msra.mxu0 %v370
  %1143 = vmatpush.bf16.msra.mxu0 %v367
  %1144 = vmatpush.bf16.msra.mxu0 %v364
  %1145 = vmatpush.bf16.msra.mxu0 %v361
  %1146 = vmatpush.bf16.msra.mxu0 %v358
  %1147 = vmatpush.bf16.msra.mxu0 %v355
  %1148 = vmatpush.bf16.msra.mxu0 %v352
  %1149 = vmatpush.bf16.msra.mxu0 %v349
  %1150 = vmatmul.bf16.gmra.mxu0 %v1115
  %v1151 = vpop.f32.mrf.mxu0
  %v1152 = vadd.f32 %v398, %v1151
  %v1153 = vpop.f32.mrf.mxu0
  %1154 = vdwg.mxu0
  %v1155 = vadd.f32 %v1114, %v1126
  %v1156 = vxor.u32 %v1155, 2147483648
  %v1157 = vmul.f32 %v1156, 1.442695
  %v1158 = vpow.pop %v1157
  %v1159 = vadd.f32 %v1158, 1.0
  %v1160 = vrcp.pop %v1159
  %v1161 = vmul.f32 %v1159, %v1160
  %v1162 = vsub.f32 1.0, %v1161
  %v1163 = vmul.f32 %v1160, %v1162
  %v1164 = vadd.f32 %v1160, %v1163
  %vm1165 = vweird.f32 %v1159
  %vm1166 = vweird.f32 %v1160
  %vm1167 = vmor %vm1165, %vm1166
  %v1168 = vsel %vm1167, %v1160, %v1164
  %v1169 = vand.u32 2147483647, %v1159
  %vm1170 = vcmp.eq.f32.partialorder %v1169, 8.507059e+37
  %v1171 = vand.u32 %v1159, 2147483648
  %v1172 = vor.u32 1.1754944e-38, %v1171
  %v1173 = vsel %vm1170, %v1172, %v1168
  %v1174 = vmul.f32 1.0, %v1173
  %v1176 = vrot.slane %v1114, 1
  %v1178 = vadd.f32 %v1176, %v1139
  %v1179 = vxor.u32 %v1178, 2147483648
  %v1180 = vmul.f32 %v1179, 1.442695
  %v1181 = vpow.pop %v1180
  %v1182 = vadd.f32 %v1181, 1.0
  %v1183 = vrcp.pop %v1182
  %v1184 = vmul.f32 %v1182, %v1183
  %v1185 = vsub.f32 1.0, %v1184
  %v1186 = vmul.f32 %v1183, %v1185
  %v1187 = vadd.f32 %v1183, %v1186
  %vm1188 = vweird.f32 %v1182
  %vm1189 = vweird.f32 %v1183
  %vm1190 = vmor %vm1188, %vm1189
  %v1191 = vsel %vm1190, %v1183, %v1187
  %v1192 = vand.u32 2147483647, %v1182
  %vm1193 = vcmp.eq.f32.partialorder %v1192, 8.507059e+37
  %v1194 = vand.u32 %v1182, 2147483648
  %v1195 = vor.u32 1.1754944e-38, %v1194
  %v1196 = vsel %vm1193, %v1195, %v1191
  %v1197 = vmul.f32 1.0, %v1196
  %v1198 = vmul.f32 %v1174, %v1152
  %v1199 = vrot.slane %v1114, 2
  %v1201 = vadd.f32 %v1199, %v1198
  %v1202 = vtanh.pop %v1201
  %v1203 = vsub.f32 1.0, %v1197
  %v1204 = vmul.f32 %v1203, %v1202
  %v1205 = vmul.f32 %v1197, %v1104
  %v1206 = vadd.f32 %v1204, %v1205
  %vm1207 = vcmp.gt.f32.partialorder %v1206, 0.0
  %v1208 = vmul.f32 %v1206, 1.442695
  %v1209 = vpow.pop %v1208
  %v1210 = vsub.f32 %v1209, 1.0
  %v1211 = vmul.f32 %v1210, 1.6732632
  %v1212 = vsel %vm1207, %v1206, %v1211
  %v1213 = vmul.f32 %v1212, 1.050701
  %1214 = vst [vmem:[#allocation3 + $0x7] sm:$0x1] %v1213
  %v1215 = vld [vmem:[#allocation3] sm:$0xff]
  %v1216 = vpack.c.bf16 %v1215, %v1215
  %1217 = vst [vmem:[%s5] sm:$0xf] %v1216
  // Predicated region
  $region22: #{traj_pre_simple.3} parent=0 // pred_check
    _
  $region23: #{traj_pre_simple.3} parent=0 // pred_check_branch
    %1219 = sbr.rel (0) target = $region25
  $region24: #{traj_pre_simple.3} parent=0 // pred_region
    _
  $region25: #{traj_pre_simple.3} parent=0 // pred_fallthru
    _
  // Predicated region
  $region26: #{traj_pre_simple.3} parent=0 // pred_check
    _
  $region27: #{traj_pre_simple.3} parent=0 // pred_check_branch
    %1221 = sbr.rel (0) target = $region29
  $region28: #{traj_pre_simple.3} parent=0 // pred_region
    _
  $region29: #{traj_pre_simple.3} parent=0 // pred_fallthru
    _

</llo_original>
